<compile_context>
chip_gen: v5e
topology: v5e:2x2
jax: 0.10.0
libtpu: 0.0.40
codegen_flags: <defaults>
</compile_context>

<pallas_src>
import jax
import jax.numpy as jnp
from jax.experimental import pallas as pl
from jax.experimental.pallas import tpu as pltpu


def _dino_loss_kernel(temps_ref,     # SMEM (2,) f32: [1/teacher_temp, 1/student_temp]
                      teacher_ref,   # VMEM (T, tb, D) native dtype
                      student_ref,   # VMEM (S, tb, D) native dtype
                      center_ref,    # VMEM (1, D) f32
                      loss_ref,      # VMEM (1, 1, 1) f32 per-core off-diag pair sum
                      tsum_ref,      # VMEM (1, 1, D) f32 per-core raw teacher feature sum
                      dot_acc,       # VMEM (tb, D) f32 scratch: lane-wise dot partials
                      lse_acc,       # VMEM (tb, 1) f32 scratch: student LSE partials
                      tsum_acc):     # VMEM (tb, D) f32 scratch: teacher feature partials
    nb = pl.program_id(1)

    @pl.when(nb == 0)
    def _init():
        dot_acc[...] = jnp.zeros_like(dot_acc)
        lse_acc[...] = jnp.zeros_like(lse_acc)
        tsum_acc[...] = jnp.zeros_like(tsum_acc)

    inv_t = temps_ref[0]
    inv_s = temps_ref[1]

    teacher = teacher_ref[...].astype(jnp.float32)     # (T, tb, D)
    student = student_ref[...].astype(jnp.float32)     # (S, tb, D)
    center = center_ref[...].astype(jnp.float32)       # (1, D)

    T = teacher.shape[0]
    S = student.shape[0]
    m = min(T, S)

    # Teacher: softmax((x - center) / teacher_temp, axis=-1).
    # Exact reciprocal so each row sums to 1 (the LSE factoring below relies on it).
    t_logits = (teacher - center) * inv_t
    t_max = jnp.max(t_logits, axis=-1, keepdims=True)
    t_exp = jnp.exp(t_logits - t_max)
    t_den = jnp.sum(t_exp, axis=-1, keepdims=True)
    t_out = t_exp * pl.reciprocal(t_den, approx=False)

    # Student: shifted logits + log-sum-exp.  s_out = s_shift - s_lse is never built.
    s_logits = student * inv_s
    s_max = jnp.max(s_logits, axis=-1, keepdims=True)
    s_shift = s_logits - s_max
    s_lse = jnp.log(jnp.sum(jnp.exp(s_shift), axis=-1, keepdims=True))   # (S, tb, 1)

    # sum_{t != s} <t_out[t], s_out[s]>
    #   = [ <sum_t t_out, sum_s s_shift> - sum_{i<m} <t_out[i], s_shift[i]> ]   (lane-wise)
    #   + [ sum_{i<m} s_lse[i] - T * sum_s s_lse[s] ]                           (per-row)
    # using sum_d t_out[t] == 1.  Leading-axis sums are pure VPU work (no XLU).
    t_sum = jnp.sum(t_out, axis=0)                             # (tb, D)
    ssh_sum = jnp.sum(s_shift, axis=0)                         # (tb, D)
    diag_dot = jnp.sum(t_out[:m] * s_shift[:m], axis=0)        # (tb, D)
    dot_acc[...] = dot_acc[...] + (t_sum * ssh_sum - diag_dot)
    lse_acc[...] = lse_acc[...] + (jnp.sum(s_lse[:m], axis=0)
                                   - T * jnp.sum(s_lse, axis=0))

    # Raw teacher feature sum for the center EMA (sublane reduce deferred).
    tsum_acc[...] = tsum_acc[...] + jnp.sum(teacher, axis=0)   # (tb, D)

    # Final cross-lane / cross-sublane reductions and lane-sparse stores: once per core.
    @pl.when(nb == pl.num_programs(1) - 1)
    def _finalize():
        total = jnp.sum(dot_acc[...]) + jnp.sum(lse_acc[...])
        loss_ref[...] = jnp.reshape(total, (1, 1, 1))
        tsum_ref[...] = jnp.sum(tsum_acc[...], axis=0, keepdims=True).reshape(1, 1, -1)


def _tpu_physical_vmem_bytes():
    """Best-effort physical VMEM per TensorCore."""
    try:
        return int(pltpu.get_tpu_info().vmem_capacity_bytes)
    except Exception:
        pass
    try:
        kind = jax.devices()[0].device_kind.lower()
    except Exception:
        kind = ""
    if "v7" in kind:
        return 64 * 1024 * 1024
    return 128 * 1024 * 1024


def _num_tensorcores():
    """TensorCores reachable through a 'parallel' grid axis (best effort)."""
    try:
        kind = jax.devices()[0].device_kind.lower()
    except Exception:
        return 1
    return 2 if any(tag in kind for tag in ("v4", "v5p", "v7")) else 1


def _pick_batch_tile(B, T, S, D, in_itemsize, vmem_budget_bytes, max_batch_tile=None):
    """Largest tb that divides B, respects sublane tiling and fits the VMEM budget."""
    sublane = 8 if in_itemsize >= 4 else (16 if in_itemsize == 2 else 32)
    # Bytes held in VMEM per batch row: double-buffered input blocks
    # + ~5 live full-block f32 temporaries + f32 scratch accumulators.
    per_row = (2 * (T + S) * D * in_itemsize
               + 5 * (T + S) * D * 4
               + 2 * D * 4 + 1024)
    tb_cap = max(sublane, (vmem_budget_bytes // per_row) // sublane * sublane)
    if max_batch_tile is not None:
        tb_cap = min(tb_cap, max(sublane, int(max_batch_tile)))
    tb_cap = min(tb_cap, B)
    tb = 0
    cand = sublane
    while cand <= tb_cap:
        if B % cand == 0:
            tb = cand
        cand += sublane
    if tb == 0:
        tb = B   # full-extent block; allowed even when B is not sublane-aligned
    return tb


def dino_loss(teacher_views, student_views, center, epoch, *,
              warmup_teacher_temp=0.04, teacher_temp=0.04,
              warmup_teacher_temp_epochs=30, student_temp=0.1,
              center_momentum=0.9, max_batch_tile=None, num_parallel=None):
    """Returns (loss_scalar, new_center[1, 1, D])."""
    # Keep native dtype (bf16 ok) -- do NOT upcast in HBM; cast in-kernel.
    teacher = jnp.stack(teacher_views)                  # (T, B, D)
    student = jnp.stack(student_views)                  # (S, B, D)
    T, B, D = teacher.shape
    S = student.shape[0]

    # Generation-aware VMEM limit (~40 MiB on 64 MiB v7x, ~80 MiB on 128 MiB v5e/v6e).
    phys_vmem = _tpu_physical_vmem_bytes()
    vmem_limit = min(int(phys_vmem * 0.625), 96 * 1024 * 1024)

    in_itemsize = max(teacher.dtype.itemsize, student.dtype.itemsize)
    tb = _pick_batch_tile(B, T, S, D, in_itemsize, int(vmem_limit * 0.65),
                          max_batch_tile=max_batch_tile)
    n_tiles = B // tb

    if num_parallel is None:
        num_parallel = _num_tensorcores()
    NP = num_parallel if (num_parallel >= 1 and n_tiles >= num_parallel
                          and n_tiles % num_parallel == 0) else 1
    NB = n_tiles // NP

    center2d = jnp.asarray(center, jnp.float32).reshape(1, D)

    # Teacher temperature warmup schedule (plain-JAX glue).
    schedule = jnp.linspace(warmup_teacher_temp, teacher_temp,
                            warmup_teacher_temp_epochs).astype(jnp.float32)
    e = jnp.asarray(epoch, jnp.int32)
    t_temp = jnp.where(
        e < warmup_teacher_temp_epochs,
        schedule[jnp.clip(e, 0, warmup_teacher_temp_epochs - 1)],
        jnp.float32(teacher_temp))
    temps = jnp.stack([1.0 / t_temp,
                       jnp.float32(1.0 / student_temp)]).astype(jnp.float32)

    elems = (T + S) * B * D
    cost = pl.CostEstimate(
        flops=int(10 * elems + 4 * min(T, S) * B * D),
        transcendentals=int(elems),
        bytes_accessed=int(teacher.size * teacher.dtype.itemsize
                           + student.size * student.dtype.itemsize
                           + 4 * D * (1 + NP) + 4 * NP))

    loss_part, tsum_part = pl.pallas_call(
        _dino_loss_kernel,
        out_shape=(jax.ShapeDtypeStruct((NP, 1, 1), jnp.float32),
                   jax.ShapeDtypeStruct((NP, 1, D), jnp.float32)),
        grid_spec=pltpu.PrefetchScalarGridSpec(
            num_scalar_prefetch=1,
            grid=(NP, NB),
            in_specs=[
                pl.BlockSpec((T, tb, D), lambda p, nb, _t: (0, p * NB + nb, 0)),
                pl.BlockSpec((S, tb, D), lambda p, nb, _t: (0, p * NB + nb, 0)),
                pl.BlockSpec((1, D), lambda p, nb, _t: (0, 0)),
            ],
            out_specs=(
                pl.BlockSpec((1, 1, 1), lambda p, nb, _t: (p, 0, 0)),
                pl.BlockSpec((1, 1, D), lambda p, nb, _t: (p, 0, 0)),
            ),
            scratch_shapes=[pltpu.VMEM((tb, D), jnp.float32),
                            pltpu.VMEM((tb, 1), jnp.float32),
                            pltpu.VMEM((tb, D), jnp.float32)]),
        compiler_params=pltpu.CompilerParams(
            dimension_semantics=("parallel", "arbitrary"),
            vmem_limit_bytes=int(vmem_limit)),
        cost_estimate=cost,
    )(temps, teacher, student, center2d)

    n_terms = T * S - min(T, S)
    loss = -jnp.sum(loss_part) / float(n_terms * B)

    # Center EMA (no_grad path of the module).
    # TODO(synk): torch.distributed all_reduce of batch_center is not implemented
    # (single-process kernel); add a wrapper-level jax.lax.pmean if the batch is sharded.
    batch_center = jnp.sum(tsum_part, axis=0) / float(T * B)      # (1, D)
    new_center = (center2d * center_momentum
                  + batch_center * (1.0 - center_momentum))
    return loss, new_center.reshape(1, 1, D)


def _reference(teacher_views, student_views, center, epoch, *,
               warmup_teacher_temp=0.04, teacher_temp=0.04,
               warmup_teacher_temp_epochs=30, student_temp=0.1,
               center_momentum=0.9):
    """Pure-JAX replica of the PyTorch forward, for correctness checking."""
    schedule = jnp.linspace(warmup_teacher_temp, teacher_temp,
                            warmup_teacher_temp_epochs)
    if epoch < warmup_teacher_temp_epochs:
        t_temp = schedule[epoch]
    else:
        t_temp = jnp.float32(teacher_temp)
    teacher = jnp.stack(teacher_views).astype(jnp.float32)
    student = jnp.stack(student_views).astype(jnp.float32)
    t_out = jax.nn.softmax((teacher - center) / t_temp, axis=-1)
    s_out = jax.nn.log_softmax(student / student_temp, axis=-1)
    loss = -jnp.einsum('tbd,sbd->ts', t_out, s_out)
    T, S = loss.shape
    loss = jnp.where(jnp.eye(T, S, dtype=bool), 0.0, loss)
    n_terms = loss.size - min(T, S)
    batch_size = teacher.shape[1]
    loss_val = loss.sum() / (n_terms * batch_size)
    new_center = (center * center_momentum
                  + teacher.mean(axis=(0, 1), keepdims=True)
                  * (1.0 - center_momentum))
    return loss_val, new_center


if __name__ == "__main__":
    key = jax.random.PRNGKey(0)
    D = 128          # output_dim (lane-dense)
    B = 64           # batch size
    n_teacher, n_student = 2, 4   # 2 global teacher views, 4 student views

    keys = jax.random.split(key, n_teacher + n_student)
    teacher_views = [jax.random.normal(keys[i], (B, D), jnp.float32)
                     for i in range(n_teacher)]
    student_views = [jax.random.normal(keys[n_teacher + i], (B, D), jnp.float32)
                     for i in range(n_student)]

    # buffer from __init__: center = zeros(1, 1, output_dim)
    center = jnp.zeros((1, 1, D), jnp.float32)
    epoch = 0

    ref_loss, ref_center = _reference(teacher_views, student_views, center, epoch)
    ref_l = float(ref_loss)

    # (a) auto-tuned tile (single big tile at these demo shapes).
    loss_a, center_a = dino_loss(teacher_views, student_views, center, epoch)
    # (b) forced small tiles: exercises multi-tile accumulation + the parallel axis.
    loss_b, center_b = dino_loss(teacher_views, student_views, center, epoch,
                                 max_batch_tile=16, num_parallel=2)
    jax.block_until_ready((loss_a, center_a, loss_b, center_b))

    for loss, new_center in ((loss_a, center_a), (loss_b, center_b)):
        assert abs(float(loss) - ref_l) < 5e-3 * max(1.0, abs(ref_l)), (float(loss), ref_l)
        assert float(jnp.max(jnp.abs(new_center - ref_center))) < 1e-5

    print("KERNEL_OK")
</pallas_src>

<mosaic_0001>
module attributes {stable_mosaic.version = 11 : i64} {
  func.func @_dino_loss_kernel(%arg0: i32, %arg1: i32, %arg2: memref<2xf32, #tpu.memory_space<smem>>, %arg3: memref<2x64x128xf32, #tpu.memory_space<vmem>>, %arg4: memref<4x64x128xf32, #tpu.memory_space<vmem>>, %arg5: memref<1x128xf32, #tpu.memory_space<vmem>>, %arg6: memref<1x1x1xf32, #tpu.memory_space<vmem>>, %arg7: memref<1x1x128xf32, #tpu.memory_space<vmem>>, %arg8: memref<64x128xf32, #tpu.memory_space<vmem>>, %arg9: memref<64x1xf32, #tpu.memory_space<vmem>>, %arg10: memref<64x128xf32, #tpu.memory_space<vmem>>) attributes {dimension_semantics = [#tpu.dimension_semantics<parallel>, #tpu.dimension_semantics<arbitrary>], iteration_bounds = array<i64: 1, 1>, scalar_prefetch = 1 : i64, scratch_operands = 3 : i64, tpu.core_type = #tpu.core_type<tc>, window_params = [{transform_indices = @transform_0, window_bounds = array<i64: 2, 64, 128>}, {transform_indices = @transform_1, window_bounds = array<i64: 4, 64, 128>}, {pipeline_mode = #tpu.pipeline_mode<synchronous>, transform_indices = @transform_2, window_bounds = array<i64: 1, 128>}, {transform_indices = @transform_3, window_bounds = array<i64: 1, 1, 1>}, {transform_indices = @transform_4, window_bounds = array<i64: 1, 1, 128>}]} {
    %c0_i32 = arith.constant 0 : i32
    %0 = arith.cmpi eq, %arg1, %c0_i32 : i32
    %1 = arith.extui %0 : i1 to i32
    %c0_i32_0 = arith.constant 0 : i32
    %2 = arith.cmpi ne, %1, %c0_i32_0 : i32
    scf.if %2 {
      %cst_33 = arith.constant 0.000000e+00 : f32
      %59 = vector.broadcast %cst_33 : f32 to vector<64x128xf32>
      %c0_34 = arith.constant 0 : index
      %c0_35 = arith.constant 0 : index
      %60 = vector.load %arg8[%c0_34, %c0_35] : memref<64x128xf32, #tpu.memory_space<vmem>>, vector<64x128xf32>
      tpu.vector_store %arg8[%c0_34, %c0_35], %59 {strides = array<i32>} : memref<64x128xf32, #tpu.memory_space<vmem>>, vector<64x128xf32>,
      %cst_36 = arith.constant 0.000000e+00 : f32
      %61 = vector.broadcast %cst_36 : f32 to vector<64x1xf32>
      %c0_37 = arith.constant 0 : index
      %c0_38 = arith.constant 0 : index
      %62 = vector.load %arg9[%c0_37, %c0_38] : memref<64x1xf32, #tpu.memory_space<vmem>>, vector<64x1xf32>
      tpu.vector_store %arg9[%c0_37, %c0_38], %61 {strides = array<i32>} : memref<64x1xf32, #tpu.memory_space<vmem>>, vector<64x1xf32>,
      %cst_39 = arith.constant 0.000000e+00 : f32
      %63 = vector.broadcast %cst_39 : f32 to vector<64x128xf32>
      %c0_40 = arith.constant 0 : index
      %c0_41 = arith.constant 0 : index
      %64 = vector.load %arg10[%c0_40, %c0_41] : memref<64x128xf32, #tpu.memory_space<vmem>>, vector<64x128xf32>
      tpu.vector_store %arg10[%c0_40, %c0_41], %63 {strides = array<i32>} : memref<64x128xf32, #tpu.memory_space<vmem>>, vector<64x128xf32>,
    } else {
    }
    %c0 = arith.constant 0 : index
    %3 = memref.load %arg2[%c0] : memref<2xf32, #tpu.memory_space<smem>>
    %c1 = arith.constant 1 : index
    %4 = memref.load %arg2[%c1] : memref<2xf32, #tpu.memory_space<smem>>
    %c0_1 = arith.constant 0 : index
    %c0_2 = arith.constant 0 : index
    %c0_3 = arith.constant 0 : index
    %5 = vector.load %arg3[%c0_1, %c0_2, %c0_3] : memref<2x64x128xf32, #tpu.memory_space<vmem>>, vector<2x64x128xf32>
    %c0_4 = arith.constant 0 : index
    %c0_5 = arith.constant 0 : index
    %c0_6 = arith.constant 0 : index
    %6 = vector.load %arg4[%c0_4, %c0_5, %c0_6] : memref<4x64x128xf32, #tpu.memory_space<vmem>>, vector<4x64x128xf32>
    %c0_7 = arith.constant 0 : index
    %c0_8 = arith.constant 0 : index
    %7 = vector.load %arg5[%c0_7, %c0_8] : memref<1x128xf32, #tpu.memory_space<vmem>>, vector<1x128xf32>
    %8 = vector.shape_cast %7 : vector<1x128xf32> to vector<1x1x128xf32>
    %9 = vector.broadcast %8 : vector<1x1x128xf32> to vector<2x64x128xf32>
    %10 = arith.subf %5, %9 : vector<2x64x128xf32>
    %11 = vector.broadcast %3 : f32 to vector<2x64x128xf32>
    %12 = arith.mulf %10, %11 : vector<2x64x128xf32>
    %cst = arith.constant dense<0xFF800000> : vector<2x64xf32>
    %13 = vector.multi_reduction <maximumf>, %12, %cst [2] : vector<2x64x128xf32> to vector<2x64xf32>
    %14 = vector.shape_cast %13 : vector<2x64xf32> to vector<2x64x1xf32>
    %15 = vector.broadcast %14 : vector<2x64x1xf32> to vector<2x64x128xf32>
    %16 = arith.subf %12, %15 : vector<2x64x128xf32>
    %17 = math.exp %16 : vector<2x64x128xf32>
    %cst_9 = arith.constant dense<0.000000e+00> : vector<2x64xf32>
    %18 = vector.multi_reduction <add>, %17, %cst_9 [2] : vector<2x64x128xf32> to vector<2x64xf32>
    %19 = vector.shape_cast %18 : vector<2x64xf32> to vector<2x64x1xf32>
    %20 = tpu.reciprocal %19 : vector<2x64x1xf32> -> vector<2x64x1xf32>
    %21 = vector.broadcast %20 : vector<2x64x1xf32> to vector<2x64x128xf32>
    %22 = arith.mulf %17, %21 : vector<2x64x128xf32>
    %23 = vector.broadcast %4 : f32 to vector<4x64x128xf32>
    %24 = arith.mulf %6, %23 : vector<4x64x128xf32>
    %cst_10 = arith.constant dense<0xFF800000> : vector<4x64xf32>
    %25 = vector.multi_reduction <maximumf>, %24, %cst_10 [2] : vector<4x64x128xf32> to vector<4x64xf32>
    %26 = vector.shape_cast %25 : vector<4x64xf32> to vector<4x64x1xf32>
    %27 = vector.broadcast %26 : vector<4x64x1xf32> to vector<4x64x128xf32>
    %28 = arith.subf %24, %27 : vector<4x64x128xf32>
    %29 = math.exp %28 : vector<4x64x128xf32>
    %cst_11 = arith.constant dense<0.000000e+00> : vector<4x64xf32>
    %30 = vector.multi_reduction <add>, %29, %cst_11 [2] : vector<4x64x128xf32> to vector<4x64xf32>
    %31 = vector.shape_cast %30 : vector<4x64xf32> to vector<4x64x1xf32>
    %32 = math.log %31 : vector<4x64x1xf32>
    %cst_12 = arith.constant dense<0.000000e+00> : vector<64x128xf32>
    %33 = vector.multi_reduction <add>, %22, %cst_12 [0] : vector<2x64x128xf32> to vector<64x128xf32>
    %cst_13 = arith.constant dense<0.000000e+00> : vector<64x128xf32>
    %34 = vector.multi_reduction <add>, %28, %cst_13 [0] : vector<4x64x128xf32> to vector<64x128xf32>
    %35 = vector.extract_strided_slice %28 {offsets = [0, 0, 0], sizes = [2, 64, 128], strides = [1, 1, 1]} : vector<4x64x128xf32> to vector<2x64x128xf32>
    %36 = arith.mulf %22, %35 : vector<2x64x128xf32>
    %cst_14 = arith.constant dense<0.000000e+00> : vector<64x128xf32>
    %37 = vector.multi_reduction <add>, %36, %cst_14 [0] : vector<2x64x128xf32> to vector<64x128xf32>
    %c0_15 = arith.constant 0 : index
    %c0_16 = arith.constant 0 : index
    %38 = vector.load %arg8[%c0_15, %c0_16] : memref<64x128xf32, #tpu.memory_space<vmem>>, vector<64x128xf32>
    %39 = arith.mulf %33, %34 : vector<64x128xf32>
    %40 = arith.subf %39, %37 : vector<64x128xf32>
    %41 = arith.addf %38, %40 : vector<64x128xf32>
    %c0_17 = arith.constant 0 : index
    %c0_18 = arith.constant 0 : index
    %42 = vector.load %arg8[%c0_17, %c0_18] : memref<64x128xf32, #tpu.memory_space<vmem>>, vector<64x128xf32>
    tpu.vector_store %arg8[%c0_17, %c0_18], %41 {strides = array<i32>} : memref<64x128xf32, #tpu.memory_space<vmem>>, vector<64x128xf32>,
    %c0_19 = arith.constant 0 : index
    %c0_20 = arith.constant 0 : index
    %43 = vector.load %arg9[%c0_19, %c0_20] : memref<64x1xf32, #tpu.memory_space<vmem>>, vector<64x1xf32>
    %44 = vector.extract_strided_slice %32 {offsets = [0, 0, 0], sizes = [2, 64, 1], strides = [1, 1, 1]} : vector<4x64x1xf32> to vector<2x64x1xf32>
    %cst_21 = arith.constant dense<0.000000e+00> : vector<64x1xf32>
    %45 = vector.multi_reduction <add>, %44, %cst_21 [0] : vector<2x64x1xf32> to vector<64x1xf32>
    %cst_22 = arith.constant dense<0.000000e+00> : vector<64x1xf32>
    %46 = vector.multi_reduction <add>, %32, %cst_22 [0] : vector<4x64x1xf32> to vector<64x1xf32>
    %cst_23 = arith.constant 2.000000e+00 : f32
    %47 = vector.broadcast %cst_23 : f32 to vector<64x1xf32>
    %48 = arith.mulf %47, %46 : vector<64x1xf32>
    %49 = arith.subf %45, %48 : vector<64x1xf32>
    %50 = arith.addf %43, %49 : vector<64x1xf32>
    %c0_24 = arith.constant 0 : index
    %c0_25 = arith.constant 0 : index
    %51 = vector.load %arg9[%c0_24, %c0_25] : memref<64x1xf32, #tpu.memory_space<vmem>>, vector<64x1xf32>
    tpu.vector_store %arg9[%c0_24, %c0_25], %50 {strides = array<i32>} : memref<64x1xf32, #tpu.memory_space<vmem>>, vector<64x1xf32>,
    %c0_26 = arith.constant 0 : index
    %c0_27 = arith.constant 0 : index
    %52 = vector.load %arg10[%c0_26, %c0_27] : memref<64x128xf32, #tpu.memory_space<vmem>>, vector<64x128xf32>
    %cst_28 = arith.constant dense<0.000000e+00> : vector<64x128xf32>
    %53 = vector.multi_reduction <add>, %5, %cst_28 [0] : vector<2x64x128xf32> to vector<64x128xf32>
    %54 = arith.addf %52, %53 : vector<64x128xf32>
    %c0_29 = arith.constant 0 : index
    %c0_30 = arith.constant 0 : index
    %55 = vector.load %arg10[%c0_29, %c0_30] : memref<64x128xf32, #tpu.memory_space<vmem>>, vector<64x128xf32>
    tpu.vector_store %arg10[%c0_29, %c0_30], %54 {strides = array<i32>} : memref<64x128xf32, #tpu.memory_space<vmem>>, vector<64x128xf32>,
    %c0_i32_31 = arith.constant 0 : i32
    %56 = arith.cmpi eq, %arg1, %c0_i32_31 : i32
    %57 = arith.extui %56 : i1 to i32
    %c0_i32_32 = arith.constant 0 : i32
    %58 = arith.cmpi ne, %57, %c0_i32_32 : i32
    scf.if %58 {
      %c0_33 = arith.constant 0 : index
      %c0_34 = arith.constant 0 : index
      %59 = vector.load %arg8[%c0_33, %c0_34] : memref<64x128xf32, #tpu.memory_space<vmem>>, vector<64x128xf32>
      %60 = vector.shape_cast %59 : vector<64x128xf32> to vector<1x64x128xf32>
      %cst_35 = arith.constant dense<0.000000e+00> : vector<1xf32>
      %61 = vector.multi_reduction <add>, %60, %cst_35 [1, 2] : vector<1x64x128xf32> to vector<1xf32>
      %62 = vector.shape_cast %61 : vector<1xf32> to vector<1x1x1xf32>
      %63 = vector.extract %62[0, 0, 0] : f32 from vector<1x1x1xf32>
      %c0_36 = arith.constant 0 : index
      %c0_37 = arith.constant 0 : index
      %64 = vector.load %arg9[%c0_36, %c0_37] : memref<64x1xf32, #tpu.memory_space<vmem>>, vector<64x1xf32>
      %65 = vector.shape_cast %64 : vector<64x1xf32> to vector<1x64x1xf32>
      %cst_38 = arith.constant dense<0.000000e+00> : vector<1xf32>
      %66 = vector.multi_reduction <add>, %65, %cst_38 [1, 2] : vector<1x64x1xf32> to vector<1xf32>
      %67 = vector.shape_cast %66 : vector<1xf32> to vector<1x1x1xf32>
      %68 = vector.extract %67[0, 0, 0] : f32 from vector<1x1x1xf32>
      %69 = arith.addf %63, %68 : f32
      %70 = vector.broadcast %69 : f32 to vector<1x1x1xf32>
      %c0_39 = arith.constant 0 : index
      %c0_40 = arith.constant 0 : index
      %c0_41 = arith.constant 0 : index
      %71 = vector.load %arg6[%c0_39, %c0_40, %c0_41] : memref<1x1x1xf32, #tpu.memory_space<vmem>>, vector<1x1x1xf32>
      tpu.vector_store %arg6[%c0_39, %c0_40, %c0_41], %70 {strides = array<i32>} : memref<1x1x1xf32, #tpu.memory_space<vmem>>, vector<1x1x1xf32>,
      %c0_42 = arith.constant 0 : index
      %c0_43 = arith.constant 0 : index
      %72 = vector.load %arg10[%c0_42, %c0_43] : memref<64x128xf32, #tpu.memory_space<vmem>>, vector<64x128xf32>
      %cst_44 = arith.constant dense<0.000000e+00> : vector<128xf32>
      %73 = vector.multi_reduction <add>, %72, %cst_44 [0] : vector<64x128xf32> to vector<128xf32>
      %74 = vector.shape_cast %73 : vector<128xf32> to vector<1x128xf32>
      %75 = vector.shape_cast %74 : vector<1x128xf32> to vector<1x1x128xf32>
      %c0_45 = arith.constant 0 : index
      %c0_46 = arith.constant 0 : index
      %c0_47 = arith.constant 0 : index
      %76 = vector.load %arg7[%c0_45, %c0_46, %c0_47] : memref<1x1x128xf32, #tpu.memory_space<vmem>>, vector<1x1x128xf32>
      tpu.vector_store %arg7[%c0_45, %c0_46, %c0_47], %75 {strides = array<i32>} : memref<1x1x128xf32, #tpu.memory_space<vmem>>, vector<1x1x128xf32>,
    } else {
    }
    return
  }
  func.func @transform_0(%arg0: i32, %arg1: i32, %arg2: memref<2xf32, #tpu.memory_space<smem>>) -> (i32, i32, i32) {
    %c1_i32 = arith.constant 1 : i32
    %0 = arith.muli %arg0, %c1_i32 : i32
    %1 = arith.addi %0, %arg1 : i32
    %c0_i32 = arith.constant 0 : i32
    %c0_i32_0 = arith.constant 0 : i32
    %c0_i32_1 = arith.constant 0 : i32
    return %c0_i32, %1, %c0_i32_0 : i32, i32, i32
  }
  func.func @transform_1(%arg0: i32, %arg1: i32, %arg2: memref<2xf32, #tpu.memory_space<smem>>) -> (i32, i32, i32) {
    %c1_i32 = arith.constant 1 : i32
    %0 = arith.muli %arg0, %c1_i32 : i32
    %1 = arith.addi %0, %arg1 : i32
    %c0_i32 = arith.constant 0 : i32
    %c0_i32_0 = arith.constant 0 : i32
    %c0_i32_1 = arith.constant 0 : i32
    return %c0_i32, %1, %c0_i32_0 : i32, i32, i32
  }
  func.func @transform_2(%arg0: i32, %arg1: i32, %arg2: memref<2xf32, #tpu.memory_space<smem>>) -> (i32, i32) {
    %c0_i32 = arith.constant 0 : i32
    %c0_i32_0 = arith.constant 0 : i32
    %c0_i32_1 = arith.constant 0 : i32
    return %c0_i32, %c0_i32_0 : i32, i32
  }
  func.func @transform_3(%arg0: i32, %arg1: i32, %arg2: memref<2xf32, #tpu.memory_space<smem>>) -> (i32, i32, i32) {
    %c0_i32 = arith.constant 0 : i32
    %c0_i32_0 = arith.constant 0 : i32
    %c0_i32_1 = arith.constant 0 : i32
    return %arg0, %c0_i32, %c0_i32_0 : i32, i32, i32
  }
  func.func @transform_4(%arg0: i32, %arg1: i32, %arg2: memref<2xf32, #tpu.memory_space<smem>>) -> (i32, i32, i32) {
    %c0_i32 = arith.constant 0 : i32
    %c0_i32_0 = arith.constant 0 : i32
    %c0_i32_1 = arith.constant 0 : i32
    return %arg0, %c0_i32, %c0_i32_0 : i32, i32, i32
  }
}

</mosaic_0001>

<llo_original>
// kernel: tpu_custom_call.1
$region0: #{tpu_custom_call.1}
  #allocation0 [shape = 'u32[]', space=smem, size = 0x4, offset = 0x4, fixed_abs, tag = 'smem constant byte address 0x4 - core index']
  #allocation1 [shape = 'u32[72,128]{1,0:T(1,128)}', space=vmem, size = 0x9000, scoped, tag = 'internal scratch']
  #allocation2 [shape = 'f32[64,128]{1,0:T(8,128)}', space=vmem, size = 0x8000, scoped, tag = 'scratch operand']
  #allocation3 [shape = 'f32[64,1]{1,0:T(8,128)}', space=vmem, size = 0x8000, scoped, tag = 'scratch operand']
  #allocation4 [shape = 'f32[64,128]{1,0:T(8,128)}', space=vmem, size = 0x8000, scoped, tag = 'scratch operand']
  #allocation5 [shape = 's32[1]{0}', space=sflag, size = 0x4, scoped, tag = 'scoped memory for tpu_custom_call.1']
  #allocation6 [shape = 'u8[512]{0}', space=smem, size = 0x200, scoped, tag = 'prefetched SMEM operand 0']
  %s0 = inlined_call_operand.hbm [shape: f32[2], index: 0, kind: input, shape index: {}]
  %s1 = inlined_call_operand.hbm [shape: f32[2,64,128], index: 1, kind: input, shape index: {}]
  %s2 = inlined_call_operand.hbm [shape: f32[4,64,128], index: 2, kind: input, shape index: {}]
  %s3 = inlined_call_operand.vmem [shape: f32[1,128], index: 3, kind: input, shape index: {}]
  %s4 = inlined_call_operand.hbm [shape: f32[1,1,1], index: 4, kind: output, shape index: {0}]
  %s5 = inlined_call_operand.hbm [shape: f32[1,1,128], index: 5, kind: output, shape index: {1}]
  %6 = xla_tuple %s4, %s5
  %s7 = sld [smem:[#allocation0]]
  $region46: #{tpu_custom_call.1} parent=0
    _
  %s9 = ssub.s32 1, %s7
  %s10 = scalar_select 0, %s9, %s7
  %s12 = sshll.u32 %s0, 4
  %s13 = int_to_ptr.hbm [resolvable:$true] %s12
  %15 = dma.hbm_to_smem %s13, 16, [#allocation6], [#allocation5]
  %17 = dma.done [#allocation5], 16
  %18 = sfence
  $region1: #{tpu_custom_call.1} parent=0
    #allocation7 [shape = 'u8[65536]{0}', space=vmem, size = 0x10000, scoped, tag = 'input window, operand 1, single buffered']
    #allocation8 [shape = 's32[1]{0}', space=sflag, size = 0x4, scoped, tag = 'scoped memory for tpu_custom_call.1']
    #allocation9 [shape = 's32[1]{0}', space=sflag, size = 0x4, scoped, tag = 'scoped memory for tpu_custom_call.1']
    #allocation10 [shape = 'u8[131072]{0}', space=vmem, size = 0x20000, scoped, tag = 'input window, operand 2, single buffered']
    #allocation11 [shape = 's32[1]{0}', space=sflag, size = 0x4, scoped, tag = 'scoped memory for tpu_custom_call.1']
    #allocation12 [shape = 'u8[512]{0}', space=vmem, size = 0x400, scoped, tag = 'output window, operand 0, single buffered']
    #allocation13 [shape = 'u8[512]{0}', space=vmem, size = 0x400, scoped, tag = 'output window, operand 1, single buffered']
    #allocation14 [shape = 's32[1]{0}', space=sflag, size = 0x4, scoped, tag = 'scoped memory for tpu_custom_call.1']
    %19 = vsyncpa [#allocation8], 0
    %20 = vsyncpa [#allocation11], 0
    %21 = vsyncpa [#allocation9], 0
    %22 = vsyncpa [#allocation14], 0
    // Predicated region
    $region2: #{tpu_custom_call.1} parent=1 // pred_check
      _
    $region3: #{tpu_custom_call.1} parent=1 // pred_check_branch
      %24 = sbr.rel (0) target = $region5
    $region4: #{tpu_custom_call.1} parent=1 // pred_region
      %s25 = sadd.s32 0, 0
      %s26 = smul.u32 8, %s25
      %28 = vsyncadd [#allocation8], 0
      %s29 = smul.addr %s26, 8
      %s30 = scalar_lea.hbm %s1, %s29
      %s31 = sshll.u32 %s30, 4
      %s32 = int_to_ptr.hbm [resolvable:$true] %s31
      %s33 = sshll.u32 [#allocation7], 4
      %s34 = int_to_ptr.vmem [resolvable:$true] %s33
      %39 = dma.hbm_to_vmem [thread:$0]  %s32, 2048, %s34, [#allocation8], 128, 128, 8
    $region5: #{tpu_custom_call.1} parent=1 // pred_fallthru
      _
    // Predicated region
    $region6: #{tpu_custom_call.1} parent=1 // pred_check
      _
    $region7: #{tpu_custom_call.1} parent=1 // pred_check_branch
      %41 = sbr.rel (0) target = $region9
    $region8: #{tpu_custom_call.1} parent=1 // pred_region
      %s42 = sadd.s32 0, 0
      %s43 = smul.u32 8, %s42
      %45 = vsyncadd [#allocation11], 0
      %s46 = smul.addr %s43, 8
      %s47 = scalar_lea.hbm %s2, %s46
      %s48 = sshll.u32 %s47, 4
      %s49 = int_to_ptr.hbm [resolvable:$true] %s48
      %s50 = sshll.u32 [#allocation10], 4
      %s51 = int_to_ptr.vmem [resolvable:$true] %s50
      %56 = dma.hbm_to_vmem [thread:$0]  %s49, 4096, %s51, [#allocation11], 128, 128, 8
    $region9: #{tpu_custom_call.1} parent=1 // pred_fallthru
      _
    // Predicated region
    $region10: #{tpu_custom_call.1} parent=1 // pred_check
      _
    $region11: #{tpu_custom_call.1} parent=1 // pred_check_branch
      %58 = sbr.rel (0) target = $region13
    $region12: #{tpu_custom_call.1} parent=1 // pred_region
      _
    $region13: #{tpu_custom_call.1} parent=1 // pred_fallthru
      _
    // Predicated region
    $region14: #{tpu_custom_call.1} parent=1 // pred_check
      _
    $region15: #{tpu_custom_call.1} parent=1 // pred_check_branch
      %60 = sbr.rel (0) target = $region17
    $region16: #{tpu_custom_call.1} parent=1 // pred_region
      %62 = dma.done [#allocation8], 2048
    $region17: #{tpu_custom_call.1} parent=1 // pred_fallthru
      _
    // Predicated region
    $region18: #{tpu_custom_call.1} parent=1 // pred_check
      _
    $region19: #{tpu_custom_call.1} parent=1 // pred_check_branch
      %64 = sbr.rel (0) target = $region21
    $region20: #{tpu_custom_call.1} parent=1 // pred_region
      %66 = dma.done [#allocation11], 4096
    $region21: #{tpu_custom_call.1} parent=1 // pred_fallthru
      _
    %s67 = sadd.s32 0, 0
    %s68 = smul.u32 8, %s67
    %s69 = sadd.s32 0, 0
    %s70 = smul.u32 8, %s69
    %p71 = scmp.eq.s32.totalorder 0, 0
    // Predicated region
    $region22: #{tpu_custom_call.1} parent=1 // pred_check
      %p72 = pneg %p71
    $region23: #{tpu_custom_call.1} parent=1 // pred_check_branch
      %74 = sbr.rel (%p72) target = $region25
    $region24: #{tpu_custom_call.1} parent=1 // pred_region
      %75 = vst [vmem:[#allocation2] sm:$0xff] 0.0
      %76 = vst [vmem:[#allocation2 + $0x8] sm:$0xff] 0.0
      %77 = vst [vmem:[#allocation2 + $0x10] sm:$0xff] 0.0
      %78 = vst [vmem:[#allocation2 + $0x18] sm:$0xff] 0.0
      %79 = vst [vmem:[#allocation2 + $0x20] sm:$0xff] 0.0
      %80 = vst [vmem:[#allocation2 + $0x28] sm:$0xff] 0.0
      %81 = vst [vmem:[#allocation2 + $0x30] sm:$0xff] 0.0
      %82 = vst [vmem:[#allocation2 + $0x38] sm:$0xff] 0.0
      %vm83 = vcmask 7168
      %84 = vst.msk [vmem:[#allocation3] sm:$0xff] %vm83, 0.0
      %85 = vst.msk [vmem:[#allocation3 + $0x8] sm:$0xff] %vm83, 0.0
      %86 = vst.msk [vmem:[#allocation3 + $0x10] sm:$0xff] %vm83, 0.0
      %87 = vst.msk [vmem:[#allocation3 + $0x18] sm:$0xff] %vm83, 0.0
      %88 = vst.msk [vmem:[#allocation3 + $0x20] sm:$0xff] %vm83, 0.0
      %89 = vst.msk [vmem:[#allocation3 + $0x28] sm:$0xff] %vm83, 0.0
      %90 = vst.msk [vmem:[#allocation3 + $0x30] sm:$0xff] %vm83, 0.0
      %91 = vst.msk [vmem:[#allocation3 + $0x38] sm:$0xff] %vm83, 0.0
      %92 = vst [vmem:[#allocation4] sm:$0xff] 0.0
      %93 = vst [vmem:[#allocation4 + $0x8] sm:$0xff] 0.0
      %94 = vst [vmem:[#allocation4 + $0x10] sm:$0xff] 0.0
      %95 = vst [vmem:[#allocation4 + $0x18] sm:$0xff] 0.0
      %96 = vst [vmem:[#allocation4 + $0x20] sm:$0xff] 0.0
      %97 = vst [vmem:[#allocation4 + $0x28] sm:$0xff] 0.0
      %98 = vst [vmem:[#allocation4 + $0x30] sm:$0xff] 0.0
      %99 = vst [vmem:[#allocation4 + $0x38] sm:$0xff] 0.0
    $region25: #{tpu_custom_call.1} parent=1 // pred_fallthru
      _
    %s100 = sld [smem:[#allocation6]]
    %s101 = sld [smem:[#allocation6 + $0x1]]
    %v102 = vld [vmem:[#allocation7] sm:$0xff]
    %v103 = vld [vmem:[#allocation7 + $0x8] sm:$0xff]
    %v104 = vld [vmem:[#allocation7 + $0x10] sm:$0xff]
    %v105 = vld [vmem:[#allocation7 + $0x18] sm:$0xff]
    %v106 = vld [vmem:[#allocation7 + $0x20] sm:$0xff]
    %v107 = vld [vmem:[#allocation7 + $0x28] sm:$0xff]
    %v108 = vld [vmem:[#allocation7 + $0x30] sm:$0xff]
    %v109 = vld [vmem:[#allocation7 + $0x38] sm:$0xff]
    %v110 = vld [vmem:[#allocation7 + $0x40] sm:$0xff]
    %v111 = vld [vmem:[#allocation7 + $0x48] sm:$0xff]
    %v112 = vld [vmem:[#allocation7 + $0x50] sm:$0xff]
    %v113 = vld [vmem:[#allocation7 + $0x58] sm:$0xff]
    %v114 = vld [vmem:[#allocation7 + $0x60] sm:$0xff]
    %v115 = vld [vmem:[#allocation7 + $0x68] sm:$0xff]
    %v116 = vld [vmem:[#allocation7 + $0x70] sm:$0xff]
    %v117 = vld [vmem:[#allocation7 + $0x78] sm:$0xff]
    %v118 = vld [vmem:[#allocation10] sm:$0xff]
    %v119 = vld [vmem:[#allocation10 + $0x8] sm:$0xff]
    %v120 = vld [vmem:[#allocation10 + $0x10] sm:$0xff]
    %v121 = vld [vmem:[#allocation10 + $0x18] sm:$0xff]
    %v122 = vld [vmem:[#allocation10 + $0x20] sm:$0xff]
    %v123 = vld [vmem:[#allocation10 + $0x28] sm:$0xff]
    %v124 = vld [vmem:[#allocation10 + $0x30] sm:$0xff]
    %v125 = vld [vmem:[#allocation10 + $0x38] sm:$0xff]
    %v126 = vld [vmem:[#allocation10 + $0x40] sm:$0xff]
    %v127 = vld [vmem:[#allocation10 + $0x48] sm:$0xff]
    %v128 = vld [vmem:[#allocation10 + $0x50] sm:$0xff]
    %v129 = vld [vmem:[#allocation10 + $0x58] sm:$0xff]
    %v130 = vld [vmem:[#allocation10 + $0x60] sm:$0xff]
    %v131 = vld [vmem:[#allocation10 + $0x68] sm:$0xff]
    %v132 = vld [vmem:[#allocation10 + $0x70] sm:$0xff]
    %v133 = vld [vmem:[#allocation10 + $0x78] sm:$0xff]
    %v134 = vld [vmem:[#allocation10 + $0x80] sm:$0xff]
    %v135 = vld [vmem:[#allocation10 + $0x88] sm:$0xff]
    %v136 = vld [vmem:[#allocation10 + $0x90] sm:$0xff]
    %v137 = vld [vmem:[#allocation10 + $0x98] sm:$0xff]
    %v138 = vld [vmem:[#allocation10 + $0xa0] sm:$0xff]
    %v139 = vld [vmem:[#allocation10 + $0xa8] sm:$0xff]
    %v140 = vld [vmem:[#allocation10 + $0xb0] sm:$0xff]
    %v141 = vld [vmem:[#allocation10 + $0xb8] sm:$0xff]
    %v142 = vld [vmem:[#allocation10 + $0xc0] sm:$0xff]
    %v143 = vld [vmem:[#allocation10 + $0xc8] sm:$0xff]
    %v144 = vld [vmem:[#allocation10 + $0xd0] sm:$0xff]
    %v145 = vld [vmem:[#allocation10 + $0xd8] sm:$0xff]
    %v146 = vld [vmem:[#allocation10 + $0xe0] sm:$0xff]
    %v147 = vld [vmem:[#allocation10 + $0xe8] sm:$0xff]
    %v148 = vld [vmem:[#allocation10 + $0xf0] sm:$0xff]
    %v149 = vld [vmem:[#allocation10 + $0xf8] sm:$0xff]
    %v150 = vld [vmem:[%s3] sm:$0x1]
    %v152 = vperm.slane %v150, 0
    %v154 = vsub.f32 %v102, %v152
    %v155 = vsub.f32 %v103, %v152
    %v156 = vsub.f32 %v104, %v152
    %v157 = vsub.f32 %v105, %v152
    %v158 = vsub.f32 %v106, %v152
    %v159 = vsub.f32 %v107, %v152
    %v160 = vsub.f32 %v108, %v152
    %v161 = vsub.f32 %v109, %v152
    %v162 = vsub.f32 %v110, %v152
    %v163 = vsub.f32 %v111, %v152
    %v164 = vsub.f32 %v112, %v152
    %v165 = vsub.f32 %v113, %v152
    %v166 = vsub.f32 %v114, %v152
    %v167 = vsub.f32 %v115, %v152
    %v168 = vsub.f32 %v116, %v152
    %v169 = vsub.f32 %v117, %v152
    %v170 = vstv %s100
    %v171 = vmul.f32 %v154, %v170
    %v172 = vmul.f32 %v155, %v170
    %v173 = vmul.f32 %v156, %v170
    %v174 = vmul.f32 %v157, %v170
    %v175 = vmul.f32 %v158, %v170
    %v176 = vmul.f32 %v159, %v170
    %v177 = vmul.f32 %v160, %v170
    %v178 = vmul.f32 %v161, %v170
    %v179 = vmul.f32 %v162, %v170
    %v180 = vmul.f32 %v163, %v170
    %v181 = vmul.f32 %v164, %v170
    %v182 = vmul.f32 %v165, %v170
    %v183 = vmul.f32 %v166, %v170
    %v184 = vmul.f32 %v167, %v170
    %v185 = vmul.f32 %v168, %v170
    %v186 = vmul.f32 %v169, %v170
    %187 = vmax.xlane.f32.xlu0 %v171
    %v188 = vpop.xlane.xlu0 %187
    %189 = vmax.xlane.f32.xlu0 %v172
    %v190 = vpop.xlane.xlu0 %189
    %191 = vmax.xlane.f32.xlu0 %v173
    %v192 = vpop.xlane.xlu0 %191
    %193 = vmax.xlane.f32.xlu0 %v174
    %v194 = vpop.xlane.xlu0 %193
    %195 = vmax.xlane.f32.xlu0 %v175
    %v196 = vpop.xlane.xlu0 %195
    %197 = vmax.xlane.f32.xlu0 %v176
    %v198 = vpop.xlane.xlu0 %197
    %199 = vmax.xlane.f32.xlu0 %v177
    %v200 = vpop.xlane.xlu0 %199
    %201 = vmax.xlane.f32.xlu0 %v178
    %v202 = vpop.xlane.xlu0 %201
    %203 = vmax.xlane.f32.xlu0 %v179
    %v204 = vpop.xlane.xlu0 %203
    %205 = vmax.xlane.f32.xlu0 %v180
    %v206 = vpop.xlane.xlu0 %205
    %207 = vmax.xlane.f32.xlu0 %v181
    %v208 = vpop.xlane.xlu0 %207
    %209 = vmax.xlane.f32.xlu0 %v182
    %v210 = vpop.xlane.xlu0 %209
    %211 = vmax.xlane.f32.xlu0 %v183
    %v212 = vpop.xlane.xlu0 %211
    %213 = vmax.xlane.f32.xlu0 %v184
    %v214 = vpop.xlane.xlu0 %213
    %215 = vmax.xlane.f32.xlu0 %v185
    %v216 = vpop.xlane.xlu0 %215
    %217 = vmax.xlane.f32.xlu0 %v186
    %v218 = vpop.xlane.xlu0 %217
    %v219 = vsub.f32 %v171, %v188
    %v220 = vsub.f32 %v172, %v190
    %v221 = vsub.f32 %v173, %v192
    %v222 = vsub.f32 %v174, %v194
    %v223 = vsub.f32 %v175, %v196
    %v224 = vsub.f32 %v176, %v198
    %v225 = vsub.f32 %v177, %v200
    %v226 = vsub.f32 %v178, %v202
    %v227 = vsub.f32 %v179, %v204
    %v228 = vsub.f32 %v180, %v206
    %v229 = vsub.f32 %v181, %v208
    %v230 = vsub.f32 %v182, %v210
    %v231 = vsub.f32 %v183, %v212
    %v232 = vsub.f32 %v184, %v214
    %v233 = vsub.f32 %v185, %v216
    %v234 = vsub.f32 %v186, %v218
    %v235 = vmul.f32 %v219, 1.442695
    %v236 = vpow.pop %v235
    %v237 = vmul.f32 %v220, 1.442695
    %v238 = vpow.pop %v237
    %v239 = vmul.f32 %v221, 1.442695
    %v240 = vpow.pop %v239
    %v241 = vmul.f32 %v222, 1.442695
    %v242 = vpow.pop %v241
    %v243 = vmul.f32 %v223, 1.442695
    %v244 = vpow.pop %v243
    %v245 = vmul.f32 %v224, 1.442695
    %v246 = vpow.pop %v245
    %v247 = vmul.f32 %v225, 1.442695
    %v248 = vpow.pop %v247
    %v249 = vmul.f32 %v226, 1.442695
    %v250 = vpow.pop %v249
    %v251 = vmul.f32 %v227, 1.442695
    %v252 = vpow.pop %v251
    %v253 = vmul.f32 %v228, 1.442695
    %v254 = vpow.pop %v253
    %v255 = vmul.f32 %v229, 1.442695
    %v256 = vpow.pop %v255
    %v257 = vmul.f32 %v230, 1.442695
    %v258 = vpow.pop %v257
    %v259 = vmul.f32 %v231, 1.442695
    %v260 = vpow.pop %v259
    %v261 = vmul.f32 %v232, 1.442695
    %v262 = vpow.pop %v261
    %v263 = vmul.f32 %v233, 1.442695
    %v264 = vpow.pop %v263
    %v265 = vmul.f32 %v234, 1.442695
    %v266 = vpow.pop %v265
    %267 = vadd.xlane.f32.xlu0 %v236
    %v268 = vpop.xlane.xlu0 %267
    %269 = vadd.xlane.f32.xlu0 %v238
    %v270 = vpop.xlane.xlu0 %269
    %271 = vadd.xlane.f32.xlu0 %v240
    %v272 = vpop.xlane.xlu0 %271
    %273 = vadd.xlane.f32.xlu0 %v242
    %v274 = vpop.xlane.xlu0 %273
    %275 = vadd.xlane.f32.xlu0 %v244
    %v276 = vpop.xlane.xlu0 %275
    %277 = vadd.xlane.f32.xlu0 %v246
    %v278 = vpop.xlane.xlu0 %277
    %279 = vadd.xlane.f32.xlu0 %v248
    %v280 = vpop.xlane.xlu0 %279
    %281 = vadd.xlane.f32.xlu0 %v250
    %v282 = vpop.xlane.xlu0 %281
    %283 = vadd.xlane.f32.xlu0 %v252
    %v284 = vpop.xlane.xlu0 %283
    %285 = vadd.xlane.f32.xlu0 %v254
    %v286 = vpop.xlane.xlu0 %285
    %287 = vadd.xlane.f32.xlu0 %v256
    %v288 = vpop.xlane.xlu0 %287
    %289 = vadd.xlane.f32.xlu0 %v258
    %v290 = vpop.xlane.xlu0 %289
    %291 = vadd.xlane.f32.xlu0 %v260
    %v292 = vpop.xlane.xlu0 %291
    %293 = vadd.xlane.f32.xlu0 %v262
    %v294 = vpop.xlane.xlu0 %293
    %295 = vadd.xlane.f32.xlu0 %v264
    %v296 = vpop.xlane.xlu0 %295
    %297 = vadd.xlane.f32.xlu0 %v266
    %v298 = vpop.xlane.xlu0 %297
    %v299 = vrcp.pop %v268
    %v300 = vmul.f32 %v268, %v299
    %v301 = vsub.f32 1.0, %v300
    %v302 = vmul.f32 %v299, %v301
    %v303 = vadd.f32 %v299, %v302
    %vm304 = vweird.f32 %v268
    %vm305 = vweird.f32 %v299
    %vm306 = vmor %vm304, %vm305
    %v307 = vsel %vm306, %v299, %v303
    %v308 = vand.u32 2147483647, %v268
    %vm309 = vcmp.eq.f32.partialorder %v308, 8.507059e+37
    %v310 = vand.u32 %v268, 2147483648
    %v311 = vor.u32 1.1754944e-38, %v310
    %v312 = vsel %vm309, %v311, %v307
    %v313 = vrcp.pop %v270
    %v314 = vmul.f32 %v270, %v313
    %v315 = vsub.f32 1.0, %v314
    %v316 = vmul.f32 %v313, %v315
    %v317 = vadd.f32 %v313, %v316
    %vm318 = vweird.f32 %v270
    %vm319 = vweird.f32 %v313
    %vm320 = vmor %vm318, %vm319
    %v321 = vsel %vm320, %v313, %v317
    %v322 = vand.u32 2147483647, %v270
    %vm323 = vcmp.eq.f32.partialorder %v322, 8.507059e+37
    %v324 = vand.u32 %v270, 2147483648
    %v325 = vor.u32 1.1754944e-38, %v324
    %v326 = vsel %vm323, %v325, %v321
    %v327 = vrcp.pop %v272
    %v328 = vmul.f32 %v272, %v327
    %v329 = vsub.f32 1.0, %v328
    %v330 = vmul.f32 %v327, %v329
    %v331 = vadd.f32 %v327, %v330
    %vm332 = vweird.f32 %v272
    %vm333 = vweird.f32 %v327
    %vm334 = vmor %vm332, %vm333
    %v335 = vsel %vm334, %v327, %v331
    %v336 = vand.u32 2147483647, %v272
    %vm337 = vcmp.eq.f32.partialorder %v336, 8.507059e+37
    %v338 = vand.u32 %v272, 2147483648
    %v339 = vor.u32 1.1754944e-38, %v338
    %v340 = vsel %vm337, %v339, %v335
    %v341 = vrcp.pop %v274
    %v342 = vmul.f32 %v274, %v341
    %v343 = vsub.f32 1.0, %v342
    %v344 = vmul.f32 %v341, %v343
    %v345 = vadd.f32 %v341, %v344
    %vm346 = vweird.f32 %v274
    %vm347 = vweird.f32 %v341
    %vm348 = vmor %vm346, %vm347
    %v349 = vsel %vm348, %v341, %v345
    %v350 = vand.u32 2147483647, %v274
    %vm351 = vcmp.eq.f32.partialorder %v350, 8.507059e+37
    %v352 = vand.u32 %v274, 2147483648
    %v353 = vor.u32 1.1754944e-38, %v352
    %v354 = vsel %vm351, %v353, %v349
    %v355 = vrcp.pop %v276
    %v356 = vmul.f32 %v276, %v355
    %v357 = vsub.f32 1.0, %v356
    %v358 = vmul.f32 %v355, %v357
    %v359 = vadd.f32 %v355, %v358
    %vm360 = vweird.f32 %v276
    %vm361 = vweird.f32 %v355
    %vm362 = vmor %vm360, %vm361
    %v363 = vsel %vm362, %v355, %v359
    %v364 = vand.u32 2147483647, %v276
    %vm365 = vcmp.eq.f32.partialorder %v364, 8.507059e+37
    %v366 = vand.u32 %v276, 2147483648
    %v367 = vor.u32 1.1754944e-38, %v366
    %v368 = vsel %vm365, %v367, %v363
    %v369 = vrcp.pop %v278
    %v370 = vmul.f32 %v278, %v369
    %v371 = vsub.f32 1.0, %v370
    %v372 = vmul.f32 %v369, %v371
    %v373 = vadd.f32 %v369, %v372
    %vm374 = vweird.f32 %v278
    %vm375 = vweird.f32 %v369
    %vm376 = vmor %vm374, %vm375
    %v377 = vsel %vm376, %v369, %v373
    %v378 = vand.u32 2147483647, %v278
    %vm379 = vcmp.eq.f32.partialorder %v378, 8.507059e+37
    %v380 = vand.u32 %v278, 2147483648
    %v381 = vor.u32 1.1754944e-38, %v380
    %v382 = vsel %vm379, %v381, %v377
    %v383 = vrcp.pop %v280
    %v384 = vmul.f32 %v280, %v383
    %v385 = vsub.f32 1.0, %v384
    %v386 = vmul.f32 %v383, %v385
    %v387 = vadd.f32 %v383, %v386
    %vm388 = vweird.f32 %v280
    %vm389 = vweird.f32 %v383
    %vm390 = vmor %vm388, %vm389
    %v391 = vsel %vm390, %v383, %v387
    %v392 = vand.u32 2147483647, %v280
    %vm393 = vcmp.eq.f32.partialorder %v392, 8.507059e+37
    %v394 = vand.u32 %v280, 2147483648
    %v395 = vor.u32 1.1754944e-38, %v394
    %v396 = vsel %vm393, %v395, %v391
    %v397 = vrcp.pop %v282
    %v398 = vmul.f32 %v282, %v397
    %v399 = vsub.f32 1.0, %v398
    %v400 = vmul.f32 %v397, %v399
    %v401 = vadd.f32 %v397, %v400
    %vm402 = vweird.f32 %v282
    %vm403 = vweird.f32 %v397
    %vm404 = vmor %vm402, %vm403
    %v405 = vsel %vm404, %v397, %v401
    %v406 = vand.u32 2147483647, %v282
    %vm407 = vcmp.eq.f32.partialorder %v406, 8.507059e+37
    %v408 = vand.u32 %v282, 2147483648
    %v409 = vor.u32 1.1754944e-38, %v408
    %v410 = vsel %vm407, %v409, %v405
    %v411 = vrcp.pop %v284
    %v412 = vmul.f32 %v284, %v411
    %v413 = vsub.f32 1.0, %v412
    %v414 = vmul.f32 %v411, %v413
    %v415 = vadd.f32 %v411, %v414
    %vm416 = vweird.f32 %v284
    %vm417 = vweird.f32 %v411
    %vm418 = vmor %vm416, %vm417
    %v419 = vsel %vm418, %v411, %v415
    %v420 = vand.u32 2147483647, %v284
    %vm421 = vcmp.eq.f32.partialorder %v420, 8.507059e+37
    %v422 = vand.u32 %v284, 2147483648
    %v423 = vor.u32 1.1754944e-38, %v422
    %v424 = vsel %vm421, %v423, %v419
    %v425 = vrcp.pop %v286
    %v426 = vmul.f32 %v286, %v425
    %v427 = vsub.f32 1.0, %v426
    %v428 = vmul.f32 %v425, %v427
    %v429 = vadd.f32 %v425, %v428
    %vm430 = vweird.f32 %v286
    %vm431 = vweird.f32 %v425
    %vm432 = vmor %vm430, %vm431
    %v433 = vsel %vm432, %v425, %v429
    %v434 = vand.u32 2147483647, %v286
    %vm435 = vcmp.eq.f32.partialorder %v434, 8.507059e+37
    %v436 = vand.u32 %v286, 2147483648
    %v437 = vor.u32 1.1754944e-38, %v436
    %v438 = vsel %vm435, %v437, %v433
    %v439 = vrcp.pop %v288
    %v440 = vmul.f32 %v288, %v439
    %v441 = vsub.f32 1.0, %v440
    %v442 = vmul.f32 %v439, %v441
    %v443 = vadd.f32 %v439, %v442
    %vm444 = vweird.f32 %v288
    %vm445 = vweird.f32 %v439
    %vm446 = vmor %vm444, %vm445
    %v447 = vsel %vm446, %v439, %v443
    %v448 = vand.u32 2147483647, %v288
    %vm449 = vcmp.eq.f32.partialorder %v448, 8.507059e+37
    %v450 = vand.u32 %v288, 2147483648
    %v451 = vor.u32 1.1754944e-38, %v450
    %v452 = vsel %vm449, %v451, %v447
    %v453 = vrcp.pop %v290
    %v454 = vmul.f32 %v290, %v453
    %v455 = vsub.f32 1.0, %v454
    %v456 = vmul.f32 %v453, %v455
    %v457 = vadd.f32 %v453, %v456
    %vm458 = vweird.f32 %v290
    %vm459 = vweird.f32 %v453
    %vm460 = vmor %vm458, %vm459
    %v461 = vsel %vm460, %v453, %v457
    %v462 = vand.u32 2147483647, %v290
    %vm463 = vcmp.eq.f32.partialorder %v462, 8.507059e+37
    %v464 = vand.u32 %v290, 2147483648
    %v465 = vor.u32 1.1754944e-38, %v464
    %v466 = vsel %vm463, %v465, %v461
    %v467 = vrcp.pop %v292
    %v468 = vmul.f32 %v292, %v467
    %v469 = vsub.f32 1.0, %v468
    %v470 = vmul.f32 %v467, %v469
    %v471 = vadd.f32 %v467, %v470
    %vm472 = vweird.f32 %v292
    %vm473 = vweird.f32 %v467
    %vm474 = vmor %vm472, %vm473
    %v475 = vsel %vm474, %v467, %v471
    %v476 = vand.u32 2147483647, %v292
    %vm477 = vcmp.eq.f32.partialorder %v476, 8.507059e+37
    %v478 = vand.u32 %v292, 2147483648
    %v479 = vor.u32 1.1754944e-38, %v478
    %v480 = vsel %vm477, %v479, %v475
    %v481 = vrcp.pop %v294
    %v482 = vmul.f32 %v294, %v481
    %v483 = vsub.f32 1.0, %v482
    %v484 = vmul.f32 %v481, %v483
    %v485 = vadd.f32 %v481, %v484
    %vm486 = vweird.f32 %v294
    %vm487 = vweird.f32 %v481
    %vm488 = vmor %vm486, %vm487
    %v489 = vsel %vm488, %v481, %v485
    %v490 = vand.u32 2147483647, %v294
    %vm491 = vcmp.eq.f32.partialorder %v490, 8.507059e+37
    %v492 = vand.u32 %v294, 2147483648
    %v493 = vor.u32 1.1754944e-38, %v492
    %v494 = vsel %vm491, %v493, %v489
    %v495 = vrcp.pop %v296
    %v496 = vmul.f32 %v296, %v495
    %v497 = vsub.f32 1.0, %v496
    %v498 = vmul.f32 %v495, %v497
    %v499 = vadd.f32 %v495, %v498
    %vm500 = vweird.f32 %v296
    %vm501 = vweird.f32 %v495
    %vm502 = vmor %vm500, %vm501
    %v503 = vsel %vm502, %v495, %v499
    %v504 = vand.u32 2147483647, %v296
    %vm505 = vcmp.eq.f32.partialorder %v504, 8.507059e+37
    %v506 = vand.u32 %v296, 2147483648
    %v507 = vor.u32 1.1754944e-38, %v506
    %v508 = vsel %vm505, %v507, %v503
    %v509 = vrcp.pop %v298
    %v510 = vmul.f32 %v298, %v509
    %v511 = vsub.f32 1.0, %v510
    %v512 = vmul.f32 %v509, %v511
    %v513 = vadd.f32 %v509, %v512
    %vm514 = vweird.f32 %v298
    %vm515 = vweird.f32 %v509
    %vm516 = vmor %vm514, %vm515
    %v517 = vsel %vm516, %v509, %v513
    %v518 = vand.u32 2147483647, %v298
    %vm519 = vcmp.eq.f32.partialorder %v518, 8.507059e+37
    %v520 = vand.u32 %v298, 2147483648
    %v521 = vor.u32 1.1754944e-38, %v520
    %v522 = vsel %vm519, %v521, %v517
    %v523 = vmul.f32 %v236, %v312
    %v524 = vmul.f32 %v238, %v326
    %v525 = vmul.f32 %v240, %v340
    %v526 = vmul.f32 %v242, %v354
    %v527 = vmul.f32 %v244, %v368
    %v528 = vmul.f32 %v246, %v382
    %v529 = vmul.f32 %v248, %v396
    %v530 = vmul.f32 %v250, %v410
    %v531 = vmul.f32 %v252, %v424
    %v532 = vmul.f32 %v254, %v438
    %v533 = vmul.f32 %v256, %v452
    %v534 = vmul.f32 %v258, %v466
    %v535 = vmul.f32 %v260, %v480
    %v536 = vmul.f32 %v262, %v494
    %v537 = vmul.f32 %v264, %v508
    %v538 = vmul.f32 %v266, %v522
    %v539 = vstv %s101
    %v540 = vmul.f32 %v118, %v539
    %v541 = vmul.f32 %v119, %v539
    %v542 = vmul.f32 %v120, %v539
    %v543 = vmul.f32 %v121, %v539
    %v544 = vmul.f32 %v122, %v539
    %v545 = vmul.f32 %v123, %v539
    %v546 = vmul.f32 %v124, %v539
    %v547 = vmul.f32 %v125, %v539
    %v548 = vmul.f32 %v126, %v539
    %v549 = vmul.f32 %v127, %v539
    %v550 = vmul.f32 %v128, %v539
    %v551 = vmul.f32 %v129, %v539
    %v552 = vmul.f32 %v130, %v539
    %v553 = vmul.f32 %v131, %v539
    %v554 = vmul.f32 %v132, %v539
    %v555 = vmul.f32 %v133, %v539
    %v556 = vmul.f32 %v134, %v539
    %v557 = vmul.f32 %v135, %v539
    %v558 = vmul.f32 %v136, %v539
    %v559 = vmul.f32 %v137, %v539
    %v560 = vmul.f32 %v138, %v539
    %v561 = vmul.f32 %v139, %v539
    %v562 = vmul.f32 %v140, %v539
    %v563 = vmul.f32 %v141, %v539
    %v564 = vmul.f32 %v142, %v539
    %v565 = vmul.f32 %v143, %v539
    %v566 = vmul.f32 %v144, %v539
    %v567 = vmul.f32 %v145, %v539
    %v568 = vmul.f32 %v146, %v539
    %v569 = vmul.f32 %v147, %v539
    %v570 = vmul.f32 %v148, %v539
    %v571 = vmul.f32 %v149, %v539
    %572 = vmax.xlane.f32.xlu0 %v540
    %v573 = vpop.xlane.xlu0 %572
    %574 = vmax.xlane.f32.xlu0 %v541
    %v575 = vpop.xlane.xlu0 %574
    %576 = vmax.xlane.f32.xlu0 %v542
    %v577 = vpop.xlane.xlu0 %576
    %578 = vmax.xlane.f32.xlu0 %v543
    %v579 = vpop.xlane.xlu0 %578
    %580 = vmax.xlane.f32.xlu0 %v544
    %v581 = vpop.xlane.xlu0 %580
    %582 = vmax.xlane.f32.xlu0 %v545
    %v583 = vpop.xlane.xlu0 %582
    %584 = vmax.xlane.f32.xlu0 %v546
    %v585 = vpop.xlane.xlu0 %584
    %586 = vmax.xlane.f32.xlu0 %v547
    %v587 = vpop.xlane.xlu0 %586
    %588 = vmax.xlane.f32.xlu0 %v548
    %v589 = vpop.xlane.xlu0 %588
    %590 = vmax.xlane.f32.xlu0 %v549
    %v591 = vpop.xlane.xlu0 %590
    %592 = vmax.xlane.f32.xlu0 %v550
    %v593 = vpop.xlane.xlu0 %592
    %594 = vmax.xlane.f32.xlu0 %v551
    %v595 = vpop.xlane.xlu0 %594
    %596 = vmax.xlane.f32.xlu0 %v552
    %v597 = vpop.xlane.xlu0 %596
    %598 = vmax.xlane.f32.xlu0 %v553
    %v599 = vpop.xlane.xlu0 %598
    %600 = vmax.xlane.f32.xlu0 %v554
    %v601 = vpop.xlane.xlu0 %600
    %602 = vmax.xlane.f32.xlu0 %v555
    %v603 = vpop.xlane.xlu0 %602
    %604 = vmax.xlane.f32.xlu0 %v556
    %v605 = vpop.xlane.xlu0 %604
    %606 = vmax.xlane.f32.xlu0 %v557
    %v607 = vpop.xlane.xlu0 %606
    %608 = vmax.xlane.f32.xlu0 %v558
    %v609 = vpop.xlane.xlu0 %608
    %610 = vmax.xlane.f32.xlu0 %v559
    %v611 = vpop.xlane.xlu0 %610
    %612 = vmax.xlane.f32.xlu0 %v560
    %v613 = vpop.xlane.xlu0 %612
    %614 = vmax.xlane.f32.xlu0 %v561
    %v615 = vpop.xlane.xlu0 %614
    %616 = vmax.xlane.f32.xlu0 %v562
    %v617 = vpop.xlane.xlu0 %616
    %618 = vmax.xlane.f32.xlu0 %v563
    %v619 = vpop.xlane.xlu0 %618
    %620 = vmax.xlane.f32.xlu0 %v564
    %v621 = vpop.xlane.xlu0 %620
    %622 = vmax.xlane.f32.xlu0 %v565
    %v623 = vpop.xlane.xlu0 %622
    %624 = vmax.xlane.f32.xlu0 %v566
    %v625 = vpop.xlane.xlu0 %624
    %626 = vmax.xlane.f32.xlu0 %v567
    %v627 = vpop.xlane.xlu0 %626
    %628 = vmax.xlane.f32.xlu0 %v568
    %v629 = vpop.xlane.xlu0 %628
    %630 = vmax.xlane.f32.xlu0 %v569
    %v631 = vpop.xlane.xlu0 %630
    %632 = vmax.xlane.f32.xlu0 %v570
    %v633 = vpop.xlane.xlu0 %632
    %634 = vmax.xlane.f32.xlu0 %v571
    %v635 = vpop.xlane.xlu0 %634
    %v636 = vsub.f32 %v540, %v573
    %v637 = vsub.f32 %v541, %v575
    %v638 = vsub.f32 %v542, %v577
    %v639 = vsub.f32 %v543, %v579
    %v640 = vsub.f32 %v544, %v581
    %v641 = vsub.f32 %v545, %v583
    %v642 = vsub.f32 %v546, %v585
    %v643 = vsub.f32 %v547, %v587
    %v644 = vsub.f32 %v548, %v589
    %v645 = vsub.f32 %v549, %v591
    %v646 = vsub.f32 %v550, %v593
    %v647 = vsub.f32 %v551, %v595
    %v648 = vsub.f32 %v552, %v597
    %v649 = vsub.f32 %v553, %v599
    %v650 = vsub.f32 %v554, %v601
    %v651 = vsub.f32 %v555, %v603
    %v652 = vsub.f32 %v556, %v605
    %v653 = vsub.f32 %v557, %v607
    %v654 = vsub.f32 %v558, %v609
    %v655 = vsub.f32 %v559, %v611
    %v656 = vsub.f32 %v560, %v613
    %v657 = vsub.f32 %v561, %v615
    %v658 = vsub.f32 %v562, %v617
    %v659 = vsub.f32 %v563, %v619
    %v660 = vsub.f32 %v564, %v621
    %v661 = vsub.f32 %v565, %v623
    %v662 = vsub.f32 %v566, %v625
    %v663 = vsub.f32 %v567, %v627
    %v664 = vsub.f32 %v568, %v629
    %v665 = vsub.f32 %v569, %v631
    %v666 = vsub.f32 %v570, %v633
    %v667 = vsub.f32 %v571, %v635
    %v668 = vmul.f32 %v636, 1.442695
    %v669 = vpow.pop %v668
    %v670 = vmul.f32 %v637, 1.442695
    %v671 = vpow.pop %v670
    %v672 = vmul.f32 %v638, 1.442695
    %v673 = vpow.pop %v672
    %v674 = vmul.f32 %v639, 1.442695
    %v675 = vpow.pop %v674
    %v676 = vmul.f32 %v640, 1.442695
    %v677 = vpow.pop %v676
    %v678 = vmul.f32 %v641, 1.442695
    %v679 = vpow.pop %v678
    %v680 = vmul.f32 %v642, 1.442695
    %v681 = vpow.pop %v680
    %v682 = vmul.f32 %v643, 1.442695
    %v683 = vpow.pop %v682
    %v684 = vmul.f32 %v644, 1.442695
    %v685 = vpow.pop %v684
    %v686 = vmul.f32 %v645, 1.442695
    %v687 = vpow.pop %v686
    %v688 = vmul.f32 %v646, 1.442695
    %v689 = vpow.pop %v688
    %v690 = vmul.f32 %v647, 1.442695
    %v691 = vpow.pop %v690
    %v692 = vmul.f32 %v648, 1.442695
    %v693 = vpow.pop %v692
    %v694 = vmul.f32 %v649, 1.442695
    %v695 = vpow.pop %v694
    %v696 = vmul.f32 %v650, 1.442695
    %v697 = vpow.pop %v696
    %v698 = vmul.f32 %v651, 1.442695
    %v699 = vpow.pop %v698
    %v700 = vmul.f32 %v652, 1.442695
    %v701 = vpow.pop %v700
    %v702 = vmul.f32 %v653, 1.442695
    %v703 = vpow.pop %v702
    %v704 = vmul.f32 %v654, 1.442695
    %v705 = vpow.pop %v704
    %v706 = vmul.f32 %v655, 1.442695
    %v707 = vpow.pop %v706
    %v708 = vmul.f32 %v656, 1.442695
    %v709 = vpow.pop %v708
    %v710 = vmul.f32 %v657, 1.442695
    %v711 = vpow.pop %v710
    %v712 = vmul.f32 %v658, 1.442695
    %v713 = vpow.pop %v712
    %v714 = vmul.f32 %v659, 1.442695
    %v715 = vpow.pop %v714
    %v716 = vmul.f32 %v660, 1.442695
    %v717 = vpow.pop %v716
    %v718 = vmul.f32 %v661, 1.442695
    %v719 = vpow.pop %v718
    %v720 = vmul.f32 %v662, 1.442695
    %v721 = vpow.pop %v720
    %v722 = vmul.f32 %v663, 1.442695
    %v723 = vpow.pop %v722
    %v724 = vmul.f32 %v664, 1.442695
    %v725 = vpow.pop %v724
    %v726 = vmul.f32 %v665, 1.442695
    %v727 = vpow.pop %v726
    %v728 = vmul.f32 %v666, 1.442695
    %v729 = vpow.pop %v728
    %v730 = vmul.f32 %v667, 1.442695
    %v731 = vpow.pop %v730
    %732 = vadd.xlane.f32.xlu0 %v669
    %v733 = vpop.xlane.xlu0 %732
    %734 = vadd.xlane.f32.xlu0 %v671
    %v735 = vpop.xlane.xlu0 %734
    %736 = vadd.xlane.f32.xlu0 %v673
    %v737 = vpop.xlane.xlu0 %736
    %738 = vadd.xlane.f32.xlu0 %v675
    %v739 = vpop.xlane.xlu0 %738
    %740 = vadd.xlane.f32.xlu0 %v677
    %v741 = vpop.xlane.xlu0 %740
    %742 = vadd.xlane.f32.xlu0 %v679
    %v743 = vpop.xlane.xlu0 %742
    %744 = vadd.xlane.f32.xlu0 %v681
    %v745 = vpop.xlane.xlu0 %744
    %746 = vadd.xlane.f32.xlu0 %v683
    %v747 = vpop.xlane.xlu0 %746
    %748 = vadd.xlane.f32.xlu0 %v685
    %v749 = vpop.xlane.xlu0 %748
    %750 = vadd.xlane.f32.xlu0 %v687
    %v751 = vpop.xlane.xlu0 %750
    %752 = vadd.xlane.f32.xlu0 %v689
    %v753 = vpop.xlane.xlu0 %752
    %754 = vadd.xlane.f32.xlu0 %v691
    %v755 = vpop.xlane.xlu0 %754
    %756 = vadd.xlane.f32.xlu0 %v693
    %v757 = vpop.xlane.xlu0 %756
    %758 = vadd.xlane.f32.xlu0 %v695
    %v759 = vpop.xlane.xlu0 %758
    %760 = vadd.xlane.f32.xlu0 %v697
    %v761 = vpop.xlane.xlu0 %760
    %762 = vadd.xlane.f32.xlu0 %v699
    %v763 = vpop.xlane.xlu0 %762
    %764 = vadd.xlane.f32.xlu0 %v701
    %v765 = vpop.xlane.xlu0 %764
    %766 = vadd.xlane.f32.xlu0 %v703
    %v767 = vpop.xlane.xlu0 %766
    %768 = vadd.xlane.f32.xlu0 %v705
    %v769 = vpop.xlane.xlu0 %768
    %770 = vadd.xlane.f32.xlu0 %v707
    %v771 = vpop.xlane.xlu0 %770
    %772 = vadd.xlane.f32.xlu0 %v709
    %v773 = vpop.xlane.xlu0 %772
    %774 = vadd.xlane.f32.xlu0 %v711
    %v775 = vpop.xlane.xlu0 %774
    %776 = vadd.xlane.f32.xlu0 %v713
    %v777 = vpop.xlane.xlu0 %776
    %778 = vadd.xlane.f32.xlu0 %v715
    %v779 = vpop.xlane.xlu0 %778
    %780 = vadd.xlane.f32.xlu0 %v717
    %v781 = vpop.xlane.xlu0 %780
    %782 = vadd.xlane.f32.xlu0 %v719
    %v783 = vpop.xlane.xlu0 %782
    %784 = vadd.xlane.f32.xlu0 %v721
    %v785 = vpop.xlane.xlu0 %784
    %786 = vadd.xlane.f32.xlu0 %v723
    %v787 = vpop.xlane.xlu0 %786
    %788 = vadd.xlane.f32.xlu0 %v725
    %v789 = vpop.xlane.xlu0 %788
    %790 = vadd.xlane.f32.xlu0 %v727
    %v791 = vpop.xlane.xlu0 %790
    %792 = vadd.xlane.f32.xlu0 %v729
    %v793 = vpop.xlane.xlu0 %792
    %794 = vadd.xlane.f32.xlu0 %v731
    %v795 = vpop.xlane.xlu0 %794
    %v796 = vlog2.pop %v733
    %v797 = vmul.f32 %v796, 0.6931472
    %v798 = vlog2.pop %v735
    %v799 = vmul.f32 %v798, 0.6931472
    %v800 = vlog2.pop %v737
    %v801 = vmul.f32 %v800, 0.6931472
    %v802 = vlog2.pop %v739
    %v803 = vmul.f32 %v802, 0.6931472
    %v804 = vlog2.pop %v741
    %v805 = vmul.f32 %v804, 0.6931472
    %v806 = vlog2.pop %v743
    %v807 = vmul.f32 %v806, 0.6931472
    %v808 = vlog2.pop %v745
    %v809 = vmul.f32 %v808, 0.6931472
    %v810 = vlog2.pop %v747
    %v811 = vmul.f32 %v810, 0.6931472
    %v812 = vlog2.pop %v749
    %v813 = vmul.f32 %v812, 0.6931472
    %v814 = vlog2.pop %v751
    %v815 = vmul.f32 %v814, 0.6931472
    %v816 = vlog2.pop %v753
    %v817 = vmul.f32 %v816, 0.6931472
    %v818 = vlog2.pop %v755
    %v819 = vmul.f32 %v818, 0.6931472
    %v820 = vlog2.pop %v757
    %v821 = vmul.f32 %v820, 0.6931472
    %v822 = vlog2.pop %v759
    %v823 = vmul.f32 %v822, 0.6931472
    %v824 = vlog2.pop %v761
    %v825 = vmul.f32 %v824, 0.6931472
    %v826 = vlog2.pop %v763
    %v827 = vmul.f32 %v826, 0.6931472
    %v828 = vlog2.pop %v765
    %v829 = vmul.f32 %v828, 0.6931472
    %v830 = vlog2.pop %v767
    %v831 = vmul.f32 %v830, 0.6931472
    %v832 = vlog2.pop %v769
    %v833 = vmul.f32 %v832, 0.6931472
    %v834 = vlog2.pop %v771
    %v835 = vmul.f32 %v834, 0.6931472
    %v836 = vlog2.pop %v773
    %v837 = vmul.f32 %v836, 0.6931472
    %v838 = vlog2.pop %v775
    %v839 = vmul.f32 %v838, 0.6931472
    %v840 = vlog2.pop %v777
    %v841 = vmul.f32 %v840, 0.6931472
    %v842 = vlog2.pop %v779
    %v843 = vmul.f32 %v842, 0.6931472
    %v844 = vlog2.pop %v781
    %v845 = vmul.f32 %v844, 0.6931472
    %v846 = vlog2.pop %v783
    %v847 = vmul.f32 %v846, 0.6931472
    %v848 = vlog2.pop %v785
    %v849 = vmul.f32 %v848, 0.6931472
    %v850 = vlog2.pop %v787
    %v851 = vmul.f32 %v850, 0.6931472
    %v852 = vlog2.pop %v789
    %v853 = vmul.f32 %v852, 0.6931472
    %v854 = vlog2.pop %v791
    %v855 = vmul.f32 %v854, 0.6931472
    %v856 = vlog2.pop %v793
    %v857 = vmul.f32 %v856, 0.6931472
    %v858 = vlog2.pop %v795
    %v859 = vmul.f32 %v858, 0.6931472
    %v860 = vadd.f32 %v523, %v531
    %v861 = vadd.f32 %v524, %v532
    %v862 = vadd.f32 %v525, %v533
    %v863 = vadd.f32 %v526, %v534
    %v864 = vadd.f32 %v527, %v535
    %v865 = vadd.f32 %v528, %v536
    %v866 = vadd.f32 %v529, %v537
    %v867 = vadd.f32 %v530, %v538
    %v868 = vadd.f32 %v636, %v644
    %v869 = vadd.f32 %v868, %v652
    %v870 = vadd.f32 %v869, %v660
    %v871 = vadd.f32 %v637, %v645
    %v872 = vadd.f32 %v871, %v653
    %v873 = vadd.f32 %v872, %v661
    %v874 = vadd.f32 %v638, %v646
    %v875 = vadd.f32 %v874, %v654
    %v876 = vadd.f32 %v875, %v662
    %v877 = vadd.f32 %v639, %v647
    %v878 = vadd.f32 %v877, %v655
    %v879 = vadd.f32 %v878, %v663
    %v880 = vadd.f32 %v640, %v648
    %v881 = vadd.f32 %v880, %v656
    %v882 = vadd.f32 %v881, %v664
    %v883 = vadd.f32 %v641, %v649
    %v884 = vadd.f32 %v883, %v657
    %v885 = vadd.f32 %v884, %v665
    %v886 = vadd.f32 %v642, %v650
    %v887 = vadd.f32 %v886, %v658
    %v888 = vadd.f32 %v887, %v666
    %v889 = vadd.f32 %v643, %v651
    %v890 = vadd.f32 %v889, %v659
    %v891 = vadd.f32 %v890, %v667
    %v892 = vmul.f32 %v523, %v636
    %v893 = vmul.f32 %v524, %v637
    %v894 = vmul.f32 %v525, %v638
    %v895 = vmul.f32 %v526, %v639
    %v896 = vmul.f32 %v527, %v640
    %v897 = vmul.f32 %v528, %v641
    %v898 = vmul.f32 %v529, %v642
    %v899 = vmul.f32 %v530, %v643
    %v900 = vmul.f32 %v531, %v644
    %v901 = vmul.f32 %v532, %v645
    %v902 = vmul.f32 %v533, %v646
    %v903 = vmul.f32 %v534, %v647
    %v904 = vmul.f32 %v535, %v648
    %v905 = vmul.f32 %v536, %v649
    %v906 = vmul.f32 %v537, %v650
    %v907 = vmul.f32 %v538, %v651
    %v908 = vadd.f32 %v892, %v900
    %v909 = vadd.f32 %v893, %v901
    %v910 = vadd.f32 %v894, %v902
    %v911 = vadd.f32 %v895, %v903
    %v912 = vadd.f32 %v896, %v904
    %v913 = vadd.f32 %v897, %v905
    %v914 = vadd.f32 %v898, %v906
    %v915 = vadd.f32 %v899, %v907
    %v916 = vld [vmem:[#allocation2] sm:$0xff]
    %v917 = vld [vmem:[#allocation2 + $0x8] sm:$0xff]
    %v918 = vld [vmem:[#allocation2 + $0x10] sm:$0xff]
    %v919 = vld [vmem:[#allocation2 + $0x18] sm:$0xff]
    %v920 = vld [vmem:[#allocation2 + $0x20] sm:$0xff]
    %v921 = vld [vmem:[#allocation2 + $0x28] sm:$0xff]
    %v922 = vld [vmem:[#allocation2 + $0x30] sm:$0xff]
    %v923 = vld [vmem:[#allocation2 + $0x38] sm:$0xff]
    %v924 = vmul.f32 %v860, %v870
    %v925 = vmul.f32 %v861, %v873
    %v926 = vmul.f32 %v862, %v876
    %v927 = vmul.f32 %v863, %v879
    %v928 = vmul.f32 %v864, %v882
    %v929 = vmul.f32 %v865, %v885
    %v930 = vmul.f32 %v866, %v888
    %v931 = vmul.f32 %v867, %v891
    %v932 = vsub.f32 %v924, %v908
    %v933 = vsub.f32 %v925, %v909
    %v934 = vsub.f32 %v926, %v910
    %v935 = vsub.f32 %v927, %v911
    %v936 = vsub.f32 %v928, %v912
    %v937 = vsub.f32 %v929, %v913
    %v938 = vsub.f32 %v930, %v914
    %v939 = vsub.f32 %v931, %v915
    %v940 = vadd.f32 %v916, %v932
    %v941 = vadd.f32 %v917, %v933
    %v942 = vadd.f32 %v918, %v934
    %v943 = vadd.f32 %v919, %v935
    %v944 = vadd.f32 %v920, %v936
    %v945 = vadd.f32 %v921, %v937
    %v946 = vadd.f32 %v922, %v938
    %v947 = vadd.f32 %v923, %v939
    %948 = vst [vmem:[#allocation2] sm:$0xff] %v940
    %949 = vst [vmem:[#allocation2 + $0x8] sm:$0xff] %v941
    %950 = vst [vmem:[#allocation2 + $0x10] sm:$0xff] %v942
    %951 = vst [vmem:[#allocation2 + $0x18] sm:$0xff] %v943
    %952 = vst [vmem:[#allocation2 + $0x20] sm:$0xff] %v944
    %953 = vst [vmem:[#allocation2 + $0x28] sm:$0xff] %v945
    %954 = vst [vmem:[#allocation2 + $0x30] sm:$0xff] %v946
    %955 = vst [vmem:[#allocation2 + $0x38] sm:$0xff] %v947
    %v956 = vld [vmem:[#allocation3] sm:$0xff]
    %v957 = vld [vmem:[#allocation3 + $0x8] sm:$0xff]
    %v958 = vld [vmem:[#allocation3 + $0x10] sm:$0xff]
    %v959 = vld [vmem:[#allocation3 + $0x18] sm:$0xff]
    %v960 = vld [vmem:[#allocation3 + $0x20] sm:$0xff]
    %v961 = vld [vmem:[#allocation3 + $0x28] sm:$0xff]
    %v962 = vld [vmem:[#allocation3 + $0x30] sm:$0xff]
    %v963 = vld [vmem:[#allocation3 + $0x38] sm:$0xff]
    %v964 = vadd.f32 %v797, %v813
    %v965 = vadd.f32 %v799, %v815
    %v966 = vadd.f32 %v801, %v817
    %v967 = vadd.f32 %v803, %v819
    %v968 = vadd.f32 %v805, %v821
    %v969 = vadd.f32 %v807, %v823
    %v970 = vadd.f32 %v809, %v825
    %v971 = vadd.f32 %v811, %v827
    %v972 = vadd.f32 %v964, %v829
    %v973 = vadd.f32 %v972, %v845
    %v974 = vadd.f32 %v965, %v831
    %v975 = vadd.f32 %v974, %v847
    %v976 = vadd.f32 %v966, %v833
    %v977 = vadd.f32 %v976, %v849
    %v978 = vadd.f32 %v967, %v835
    %v979 = vadd.f32 %v978, %v851
    %v980 = vadd.f32 %v968, %v837
    %v981 = vadd.f32 %v980, %v853
    %v982 = vadd.f32 %v969, %v839
    %v983 = vadd.f32 %v982, %v855
    %v984 = vadd.f32 %v970, %v841
    %v985 = vadd.f32 %v984, %v857
    %v986 = vadd.f32 %v971, %v843
    %v987 = vadd.f32 %v986, %v859
    %v988 = vmul.f32 %v973, 2.0
    %v989 = vmul.f32 %v975, 2.0
    %v990 = vmul.f32 %v977, 2.0
    %v991 = vmul.f32 %v979, 2.0
    %v992 = vmul.f32 %v981, 2.0
    %v993 = vmul.f32 %v983, 2.0
    %v994 = vmul.f32 %v985, 2.0
    %v995 = vmul.f32 %v987, 2.0
    %v996 = vsub.f32 %v964, %v988
    %v997 = vsub.f32 %v965, %v989
    %v998 = vsub.f32 %v966, %v990
    %v999 = vsub.f32 %v967, %v991
    %v1000 = vsub.f32 %v968, %v992
    %v1001 = vsub.f32 %v969, %v993
    %v1002 = vsub.f32 %v970, %v994
    %v1003 = vsub.f32 %v971, %v995
    %v1004 = vadd.f32 %v956, %v996
    %v1005 = vadd.f32 %v957, %v997
    %v1006 = vadd.f32 %v958, %v998
    %v1007 = vadd.f32 %v959, %v999
    %v1008 = vadd.f32 %v960, %v1000
    %v1009 = vadd.f32 %v961, %v1001
    %v1010 = vadd.f32 %v962, %v1002
    %v1011 = vadd.f32 %v963, %v1003
    %vm1012 = vcmask 7168
    %1013 = vst.msk [vmem:[#allocation3] sm:$0xff] %vm1012, %v1004
    %1014 = vst.msk [vmem:[#allocation3 + $0x8] sm:$0xff] %vm1012, %v1005
    %1015 = vst.msk [vmem:[#allocation3 + $0x10] sm:$0xff] %vm1012, %v1006
    %1016 = vst.msk [vmem:[#allocation3 + $0x18] sm:$0xff] %vm1012, %v1007
    %1017 = vst.msk [vmem:[#allocation3 + $0x20] sm:$0xff] %vm1012, %v1008
    %1018 = vst.msk [vmem:[#allocation3 + $0x28] sm:$0xff] %vm1012, %v1009
    %1019 = vst.msk [vmem:[#allocation3 + $0x30] sm:$0xff] %vm1012, %v1010
    %1020 = vst.msk [vmem:[#allocation3 + $0x38] sm:$0xff] %vm1012, %v1011
    %v1021 = vld [vmem:[#allocation4] sm:$0xff]
    %v1022 = vld [vmem:[#allocation4 + $0x8] sm:$0xff]
    %v1023 = vld [vmem:[#allocation4 + $0x10] sm:$0xff]
    %v1024 = vld [vmem:[#allocation4 + $0x18] sm:$0xff]
    %v1025 = vld [vmem:[#allocation4 + $0x20] sm:$0xff]
    %v1026 = vld [vmem:[#allocation4 + $0x28] sm:$0xff]
    %v1027 = vld [vmem:[#allocation4 + $0x30] sm:$0xff]
    %v1028 = vld [vmem:[#allocation4 + $0x38] sm:$0xff]
    %v1029 = vadd.f32 %v102, %v110
    %v1030 = vadd.f32 %v103, %v111
    %v1031 = vadd.f32 %v104, %v112
    %v1032 = vadd.f32 %v105, %v113
    %v1033 = vadd.f32 %v106, %v114
    %v1034 = vadd.f32 %v107, %v115
    %v1035 = vadd.f32 %v108, %v116
    %v1036 = vadd.f32 %v109, %v117
    %v1037 = vadd.f32 %v1021, %v1029
    %v1038 = vadd.f32 %v1022, %v1030
    %v1039 = vadd.f32 %v1023, %v1031
    %v1040 = vadd.f32 %v1024, %v1032
    %v1041 = vadd.f32 %v1025, %v1033
    %v1042 = vadd.f32 %v1026, %v1034
    %v1043 = vadd.f32 %v1027, %v1035
    %v1044 = vadd.f32 %v1028, %v1036
    %1045 = vst [vmem:[#allocation4] sm:$0xff] %v1037
    %1046 = vst [vmem:[#allocation4 + $0x8] sm:$0xff] %v1038
    %1047 = vst [vmem:[#allocation4 + $0x10] sm:$0xff] %v1039
    %1048 = vst [vmem:[#allocation4 + $0x18] sm:$0xff] %v1040
    %1049 = vst [vmem:[#allocation4 + $0x20] sm:$0xff] %v1041
    %1050 = vst [vmem:[#allocation4 + $0x28] sm:$0xff] %v1042
    %1051 = vst [vmem:[#allocation4 + $0x30] sm:$0xff] %v1043
    %1052 = vst [vmem:[#allocation4 + $0x38] sm:$0xff] %v1044
    // Predicated region
    $region26: #{tpu_custom_call.1} parent=1 // pred_check
      %p1053 = pneg %p71
    $region27: #{tpu_custom_call.1} parent=1 // pred_check_branch
      %1055 = sbr.rel (%p1053) target = $region29
    $region28: #{tpu_custom_call.1} parent=1 // pred_region
      %v1056 = vld [vmem:[#allocation2] sm:$0xff]
      %v1057 = vld [vmem:[#allocation2 + $0x8] sm:$0xff]
      %v1058 = vld [vmem:[#allocation2 + $0x10] sm:$0xff]
      %v1059 = vld [vmem:[#allocation2 + $0x18] sm:$0xff]
      %v1060 = vld [vmem:[#allocation2 + $0x20] sm:$0xff]
      %v1061 = vld [vmem:[#allocation2 + $0x28] sm:$0xff]
      %v1062 = vld [vmem:[#allocation2 + $0x30] sm:$0xff]
      %v1063 = vld [vmem:[#allocation2 + $0x38] sm:$0xff]
      %v1064 = vadd.f32 %v1056, %v1057
      %v1065 = vadd.f32 %v1064, %v1058
      %v1066 = vadd.f32 %v1065, %v1059
      %v1067 = vadd.f32 %v1066, %v1060
      %v1068 = vadd.f32 %v1067, %v1061
      %v1069 = vadd.f32 %v1068, %v1062
      %v1070 = vadd.f32 %v1069, %v1063
      %1071 = vadd.xlane.f32.xlu0 %v1070
      %v1072 = vpop.xlane.xlu0 %1071
      %v1073 = vrot.slane %v1072, 4
      %v1074 = vadd.f32 %v1072, %v1073
      %v1075 = vrot.slane %v1074, 2
      %v1076 = vadd.f32 %v1074, %v1075
      %v1077 = vrot.slane %v1076, 1
      %v1078 = vadd.f32 %v1076, %v1077
      %s1079 = vtos %v1078
      %v1080 = vld [vmem:[#allocation3] sm:$0xff]
      %v1081 = vld [vmem:[#allocation3 + $0x8] sm:$0xff]
      %v1082 = vld [vmem:[#allocation3 + $0x10] sm:$0xff]
      %v1083 = vld [vmem:[#allocation3 + $0x18] sm:$0xff]
      %v1084 = vld [vmem:[#allocation3 + $0x20] sm:$0xff]
      %v1085 = vld [vmem:[#allocation3 + $0x28] sm:$0xff]
      %v1086 = vld [vmem:[#allocation3 + $0x30] sm:$0xff]
      %v1087 = vld [vmem:[#allocation3 + $0x38] sm:$0xff]
      %v1088 = vsel %vm1012, %v1080, 0.0
      %v1089 = vsel %vm1012, %v1081, 0.0
      %v1090 = vadd.f32 %v1088, %v1089
      %v1091 = vsel %vm1012, %v1082, 0.0
      %v1092 = vadd.f32 %v1090, %v1091
      %v1093 = vsel %vm1012, %v1083, 0.0
      %v1094 = vadd.f32 %v1092, %v1093
      %v1095 = vsel %vm1012, %v1084, 0.0
      %v1096 = vadd.f32 %v1094, %v1095
      %v1097 = vsel %vm1012, %v1085, 0.0
      %v1098 = vadd.f32 %v1096, %v1097
      %v1099 = vsel %vm1012, %v1086, 0.0
      %v1100 = vadd.f32 %v1098, %v1099
      %v1101 = vsel %vm1012, %v1087, 0.0
      %v1102 = vadd.f32 %v1100, %v1101
      %1103 = vadd.xlane.f32.xlu0 %v1102
      %v1104 = vpop.xlane.xlu0 %1103
      %v1105 = vrot.slane %v1104, 4
      %v1106 = vadd.f32 %v1104, %v1105
      %v1107 = vrot.slane %v1106, 2
      %v1108 = vadd.f32 %v1106, %v1107
      %v1109 = vrot.slane %v1108, 1
      %v1110 = vadd.f32 %v1108, %v1109
      %s1111 = vtos %v1110
      %s1112 = sadd.f32 %s1079, %s1111
      %v1113 = vstv %s1112
      %vm1114 = vcmask 0
      %1115 = vst.msk [vmem:[#allocation12] sm:$0x1] %vm1114, %v1113
      %v1116 = vld [vmem:[#allocation4] sm:$0xff]
      %v1117 = vld [vmem:[#allocation4 + $0x8] sm:$0xff]
      %v1118 = vld [vmem:[#allocation4 + $0x10] sm:$0xff]
      %v1119 = vld [vmem:[#allocation4 + $0x18] sm:$0xff]
      %v1120 = vld [vmem:[#allocation4 + $0x20] sm:$0xff]
      %v1121 = vld [vmem:[#allocation4 + $0x28] sm:$0xff]
      %v1122 = vld [vmem:[#allocation4 + $0x30] sm:$0xff]
      %v1123 = vld [vmem:[#allocation4 + $0x38] sm:$0xff]
      %v1124 = vadd.f32 %v1116, %v1117
      %v1125 = vadd.f32 %v1124, %v1118
      %v1126 = vadd.f32 %v1125, %v1119
      %v1127 = vadd.f32 %v1126, %v1120
      %v1128 = vadd.f32 %v1127, %v1121
      %v1129 = vadd.f32 %v1128, %v1122
      %v1130 = vadd.f32 %v1129, %v1123
      %v1131 = vrot.slane %v1130, 4
      %v1132 = vadd.f32 %v1130, %v1131
      %v1133 = vrot.slane %v1132, 2
      %v1134 = vadd.f32 %v1132, %v1133
      %v1135 = vrot.slane %v1134, 1
      %v1136 = vadd.f32 %v1134, %v1135
      %1137 = vst [vmem:[#allocation13] sm:$0x1] %v1136
    $region29: #{tpu_custom_call.1} parent=1 // pred_fallthru
      _
    // Predicated region
    $region30: #{tpu_custom_call.1} parent=1 // pred_check
      _
    $region31: #{tpu_custom_call.1} parent=1 // pred_check_branch
      %1139 = sbr.rel (0) target = $region33
    $region32: #{tpu_custom_call.1} parent=1 // pred_region
      %1141 = vsyncadd [#allocation9], 0
      %s1143 = sshll.u32 [#allocation12], 4
      %s1144 = int_to_ptr.vmem [resolvable:$true] %s1143
      %s1145 = sshll.u32 %s4, 4
      %s1146 = int_to_ptr.hbm [resolvable:$true] %s1145
      %1148 = dma.vmem_to_hbm [thread:$0]  %s1144, 16, %s1146, [#allocation9]
    $region33: #{tpu_custom_call.1} parent=1 // pred_fallthru
      _
    // Predicated region
    $region34: #{tpu_custom_call.1} parent=1 // pred_check
      _
    $region35: #{tpu_custom_call.1} parent=1 // pred_check_branch
      %1150 = sbr.rel (0) target = $region37
    $region36: #{tpu_custom_call.1} parent=1 // pred_region
      %1152 = vsyncadd [#allocation14], 0
      %s1154 = sshll.u32 [#allocation13], 4
      %s1155 = int_to_ptr.vmem [resolvable:$true] %s1154
      %s1156 = sshll.u32 %s5, 4
      %s1157 = int_to_ptr.hbm [resolvable:$true] %s1156
      %1159 = dma.vmem_to_hbm [thread:$0]  %s1155, 16, %s1157, [#allocation14]
    $region37: #{tpu_custom_call.1} parent=1 // pred_fallthru
      _
    // Predicated region
    $region38: #{tpu_custom_call.1} parent=1 // pred_check
      _
    $region39: #{tpu_custom_call.1} parent=1 // pred_check_branch
      %1161 = sbr.rel (0) target = $region41
    $region40: #{tpu_custom_call.1} parent=1 // pred_region
      %1163 = dma.done [#allocation9], 16
    $region41: #{tpu_custom_call.1} parent=1 // pred_fallthru
      _
    // Predicated region
    $region42: #{tpu_custom_call.1} parent=1 // pred_check
      _
    $region43: #{tpu_custom_call.1} parent=1 // pred_check_branch
      %1165 = sbr.rel (0) target = $region45
    $region44: #{tpu_custom_call.1} parent=1 // pred_region
      %1167 = dma.done [#allocation14], 16
    $region45: #{tpu_custom_call.1} parent=1 // pred_fallthru
      _
    %1168 = vsyncpa [#allocation8], 1
    %1169 = vsyncpa [#allocation11], 1
    %1170 = vsyncpa [#allocation9], 1
    %1171 = vsyncpa [#allocation14], 1

</llo_original>
